<compile_context>
chip_gen: v5e
topology: v5e:2x2
jax: 0.10.0
libtpu: 0.0.40
codegen_flags: <defaults>
</compile_context>

<pallas_src>
import jax
import jax.numpy as jnp
import numpy as np
from jax import lax
from jax.experimental import pallas as pl
from jax.experimental.pallas import tpu as pltpu

H_IN = 10                         # spatial size (forced by Linear(1024, ...))
KS = 3                            # conv kernel size
H_OUT = H_IN - KS + 1             # 8
CONV_OUT = 16
FLAT = CONV_OUT * H_OUT * H_OUT   # 1024
ROW_SLAB = H_OUT * CONV_OUT       # 128: one conv output row, (w_out, c_out) lanes
HID = 128
A_PAD = 128                       # lane-padded action dimension


# ----------------------------------------------------------------------------
# Kernel
# ----------------------------------------------------------------------------
def qnet_kernel(x_ref, cw_ref, cb_ref, w1_ref, b1_ref, w2_ref, b2_ref, o_ref):
    """One batch tile of the full forward pass.

    x_ref  : (TB, C*100) f32   NCHW-flattened observations
    cw_ref : (C*100, 1024) bf16 banded conv weight (normalization folded in);
                               column order = h_out*128 + w_out*16 + c_out
    cb_ref : (1, 1024) f32     conv bias tiled to the same column order
    w1_ref : (1024, 128) bf16  fc1 weight permuted to that column order
    b1_ref : (1, 128) f32      fc1 bias
    w2_ref : (128, 128) bf16   fc2 weight, action dim zero-padded to 128 lanes
    b2_ref : (1, 128) f32      fc2 bias, zero-padded
    o_ref  : (TB, 128) f32     q-values (padded; valid in [:, :A])
    """
    x = x_ref[...].astype(jnp.bfloat16)                   # (TB, C*100)
    tb = x.shape[0]
    acc = jnp.zeros((tb, HID), jnp.float32)

    # 8 banded row-strip conv matmuls, each fused directly into fc1.
    for h in range(H_OUT):                                # static unroll
        lo, hi = h * ROW_SLAB, (h + 1) * ROW_SLAB         # 128-lane boundaries
        row = jnp.dot(x, cw_ref[:, lo:hi],
                      preferred_element_type=jnp.float32)  # (TB, 128)
        row = jnp.maximum(row + cb_ref[:, lo:hi], 0.0)
        acc = acc + jnp.dot(row.astype(jnp.bfloat16), w1_ref[lo:hi, :],
                            preferred_element_type=jnp.float32)

    hid = jnp.maximum(acc + b1_ref[...], 0.0)
    q = jnp.dot(hid.astype(jnp.bfloat16), w2_ref[...],
                preferred_element_type=jnp.float32)
    o_ref[...] = q + b2_ref[...]                          # unmasked store


# ----------------------------------------------------------------------------
# One-time parameter preparation (NOT on the per-call path)
# ----------------------------------------------------------------------------
def prepare_params(params):
    """Fold normalization into the conv, build the banded conv-as-matmul
    weight in NCHW-flat row order, permute fc1, pad fc2, cast weights bf16."""
    conv_w = np.asarray(params["conv_w"], np.float32)   # (16, C, 3, 3) OIHW
    conv_b = np.asarray(params["conv_b"], np.float32)   # (16,)
    fc1_w = np.asarray(params["fc1_w"], np.float32)     # (128, 1024) (out, C*H*W)
    fc1_b = np.asarray(params["fc1_b"], np.float32)     # (128,)
    fc2_w = np.asarray(params["fc2_w"], np.float32)     # (A, 128)
    fc2_b = np.asarray(params["fc2_b"], np.float32)     # (A,)
    A = fc2_w.shape[0]
    C = conv_w.shape[1]
    IN_FLAT = C * H_IN * H_IN
    assert A <= A_PAD

    # Fold (x - 0.5)/0.5 = 2x - 1 into the conv:
    #   conv(2x-1, W) + b == conv(x, 2W) + (b - sum_{cin,ky,kx} W)
    w_fold = 2.0 * conv_w
    b_fold = conv_b - conv_w.sum(axis=(1, 2, 3))

    # Banded conv weight (IN_FLAT, 1024):
    #   row  = NCHW flat input index  c*100 + (h_out+ky)*10 + (w_out+kx)
    #   col  = output column          h_out*128 + w_out*16 + c_out
    ho = np.arange(H_OUT).reshape(H_OUT, 1, 1, 1, 1, 1)
    wo = np.arange(H_OUT).reshape(1, H_OUT, 1, 1, 1, 1)
    co = np.arange(CONV_OUT).reshape(1, 1, CONV_OUT, 1, 1, 1)
    ci = np.arange(C).reshape(1, 1, 1, C, 1, 1)
    ky = np.arange(KS).reshape(1, 1, 1, 1, KS, 1)
    kx = np.arange(KS).reshape(1, 1, 1, 1, 1, KS)
    rows = ci * (H_IN * H_IN) + (ho + ky) * H_IN + (wo + kx)
    cols = ho * ROW_SLAB + wo * CONV_OUT + co
    rows, cols = np.broadcast_arrays(rows, cols)
    vals = np.broadcast_to(w_fold[co, ci, ky, kx], rows.shape)
    cw = np.zeros((IN_FLAT, FLAT), np.float32)
    cw[rows.ravel(), cols.ravel()] = vals.ravel()         # no duplicate (r,c)

    # Conv bias tiled over the (h_out, w_out, c_out) column order: col j -> b[j%16].
    cb = np.tile(b_fold.reshape(1, CONV_OUT), (1, H_OUT * H_OUT))   # (1, 1024)

    # fc1 acts on a PyTorch (Cout, H, W) flatten; permute to (H, W, Cout) columns.
    w1 = fc1_w.reshape(HID, CONV_OUT, H_OUT, H_OUT).transpose(0, 2, 3, 1)
    w1 = w1.reshape(HID, FLAT).T                                     # (1024, 128)

    # fc2: transpose and zero-pad the action dim to 128 lanes.
    w2 = np.zeros((HID, A_PAD), np.float32); w2[:, :A] = fc2_w.T
    b2 = np.zeros((1, A_PAD), np.float32);  b2[0, :A] = fc2_b

    return {
        "cw": jnp.asarray(cw, jnp.bfloat16),
        "cb": jnp.asarray(cb, jnp.float32),
        "w1": jnp.asarray(w1, jnp.bfloat16),
        "b1": jnp.asarray(fc1_b.reshape(1, HID), jnp.float32),
        "w2": jnp.asarray(w2, jnp.bfloat16),
        "b2": jnp.asarray(b2, jnp.float32),
        "act_num": A,            # plain Python ints (kept out of traced args)
        "in_channels": C,
    }


# ----------------------------------------------------------------------------
# Per-call wrapper
# ----------------------------------------------------------------------------
def qnetwork_forward(obs_nchw, prepped, *, batch_tile=512):
    """obs_nchw: (B, C, 10, 10) float -> q_values (B, A)."""
    B, C, H, W = obs_nchw.shape
    assert H == H_IN and W == H_IN
    assert C == prepped["in_channels"]
    A = prepped["act_num"]
    IN_FLAT = C * H_IN * H_IN

    # Free reshape only: the banded conv weight rows were built in NCHW-flat
    # order, so no per-call transpose is needed.
    x = obs_nchw.reshape(B, IN_FLAT).astype(jnp.float32)

    TB = min(batch_tile, B)
    if B >= 16:
        # Guarantee >= 2 grid steps so the 'parallel' batch axis shards across
        # v7x's two TensorCores (harmless on single-TC v5e/v6e).
        half = ((B + 1) // 2 + 7) // 8 * 8
        TB = min(TB, half)
    if TB < B:
        TB = max(8, (TB // 8) * 8)          # sublane-aligned batch tiles
    n_tiles = pl.cdiv(B, TB)
    Bp = n_tiles * TB
    if Bp != B:
        x = jnp.pad(x, ((0, Bp - B), (0, 0)))

    cw, cb = prepped["cw"], prepped["cb"]
    w1, b1 = prepped["w1"], prepped["b1"]
    w2, b2 = prepped["w2"], prepped["b2"]

    grid_spec = pltpu.PrefetchScalarGridSpec(
        num_scalar_prefetch=0,
        grid=(n_tiles,),
        in_specs=[
            # batch-tiled, lane-dense flat input
            pl.BlockSpec((TB, IN_FLAT), lambda i: (i, 0)),
            # weights: same block every step -> single DMA, VMEM-resident
            pl.BlockSpec((IN_FLAT, FLAT), lambda i: (0, 0)),
            pl.BlockSpec((1, FLAT), lambda i: (0, 0)),
            pl.BlockSpec((FLAT, HID), lambda i: (0, 0)),
            pl.BlockSpec((1, HID), lambda i: (0, 0)),
            pl.BlockSpec((HID, A_PAD), lambda i: (0, 0)),
            pl.BlockSpec((1, A_PAD), lambda i: (0, 0)),
        ],
        out_specs=pl.BlockSpec((TB, A_PAD), lambda i: (i, 0)),
    )

    out = pl.pallas_call(
        qnet_kernel,
        out_shape=jax.ShapeDtypeStruct((Bp, A_PAD), jnp.float32),
        grid_spec=grid_spec,
        compiler_params=pltpu.CompilerParams(
            dimension_semantics=("parallel",),       # shards over v7x's 2 TCs
            vmem_limit_bytes=32 * 1024 * 1024,       # safe on v7x's 64 MiB VMEM
        ),
    )(x, cw, cb, w1, b1, w2, b2)

    return out[:B, :A]


# ----------------------------------------------------------------------------
# Pure-JAX reference (mirrors the PyTorch module exactly) + init
# ----------------------------------------------------------------------------
def reference_forward(obs_nchw, params):
    xn = (obs_nchw - 0.5) / 0.5
    y = lax.conv_general_dilated(
        xn, params["conv_w"], window_strides=(1, 1), padding="VALID",
        dimension_numbers=("NCHW", "OIHW", "NCHW"))
    y = jax.nn.relu(y + params["conv_b"][None, :, None, None])
    flat = y.reshape(obs_nchw.shape[0], -1)                          # (B, 1024)
    h = jax.nn.relu(flat @ params["fc1_w"].T + params["fc1_b"])
    return h @ params["fc2_w"].T + params["fc2_b"]


def init_params(key, in_channels, act_num):
    ks = jax.random.split(key, 6)
    return {
        "conv_w": 0.1 * jax.random.normal(ks[0], (CONV_OUT, in_channels, KS, KS), jnp.float32),
        "conv_b": 0.1 * jax.random.normal(ks[1], (CONV_OUT,), jnp.float32),
        "fc1_w": 0.05 * jax.random.normal(ks[2], (HID, FLAT), jnp.float32),
        "fc1_b": 0.05 * jax.random.normal(ks[3], (HID,), jnp.float32),
        "fc2_w": 0.05 * jax.random.normal(ks[4], (act_num, HID), jnp.float32),
        "fc2_b": 0.05 * jax.random.normal(ks[5], (act_num,), jnp.float32),
    }


if __name__ == "__main__":
    B, C, A = 2, 4, 6   # MinAtar-ish: batch=2, 4 channels, 10x10 board, 6 actions
    key = jax.random.PRNGKey(0)
    k_obs, k_par = jax.random.split(key)
    obs = jax.random.uniform(k_obs, (B, C, H_IN, H_IN), jnp.float32)
    params = init_params(k_par, C, A)

    # One-time weight preparation (normalization fold, banded conv weight,
    # fc1 permutation, fc2 padding, bf16 casts).
    prepped = prepare_params(params)

    fwd = jax.jit(lambda o: qnetwork_forward(o, prepped))
    q = jax.block_until_ready(fwd(obs))

    q_ref = reference_forward(obs, params)
    assert q.shape == (B, A)
    # bf16 matmul operands -> loosened tolerance vs. the f32 reference.
    assert jnp.allclose(q, q_ref, atol=5e-2, rtol=5e-2), (q, q_ref)

    print("KERNEL_OK")
</pallas_src>

<mosaic_0001>
module attributes {stable_mosaic.version = 11 : i64} {
  func.func @qnet_kernel(%arg0: i32, %arg1: memref<2x400xf32, #tpu.memory_space<vmem>>, %arg2: memref<400x1024xbf16, #tpu.memory_space<vmem>>, %arg3: memref<1x1024xf32, #tpu.memory_space<vmem>>, %arg4: memref<1024x128xbf16, #tpu.memory_space<vmem>>, %arg5: memref<1x128xf32, #tpu.memory_space<vmem>>, %arg6: memref<128x128xbf16, #tpu.memory_space<vmem>>, %arg7: memref<1x128xf32, #tpu.memory_space<vmem>>, %arg8: memref<2x128xf32, #tpu.memory_space<vmem>>) attributes {dimension_semantics = [#tpu.dimension_semantics<parallel>], iteration_bounds = array<i64: 1>, scalar_prefetch = 0 : i64, scratch_operands = 0 : i64, tpu.core_type = #tpu.core_type<tc>, window_params = [{transform_indices = @transform_0, window_bounds = array<i64: 2, 400>}, {pipeline_mode = #tpu.pipeline_mode<synchronous>, transform_indices = @transform_1, window_bounds = array<i64: 400, 1024>}, {pipeline_mode = #tpu.pipeline_mode<synchronous>, transform_indices = @transform_2, window_bounds = array<i64: 1, 1024>}, {pipeline_mode = #tpu.pipeline_mode<synchronous>, transform_indices = @transform_3, window_bounds = array<i64: 1024, 128>}, {pipeline_mode = #tpu.pipeline_mode<synchronous>, transform_indices = @transform_4, window_bounds = array<i64: 1, 128>}, {pipeline_mode = #tpu.pipeline_mode<synchronous>, transform_indices = @transform_5, window_bounds = array<i64: 128, 128>}, {pipeline_mode = #tpu.pipeline_mode<synchronous>, transform_indices = @transform_6, window_bounds = array<i64: 1, 128>}, {transform_indices = @transform_7, window_bounds = array<i64: 2, 128>}]} {
    %c0 = arith.constant 0 : index
    %c0_0 = arith.constant 0 : index
    %0 = vector.load %arg1[%c0, %c0_0] : memref<2x400xf32, #tpu.memory_space<vmem>>, vector<2x400xf32>
    %1 = arith.truncf %0 : vector<2x400xf32> to vector<2x400xbf16>
    %cst = arith.constant 0.000000e+00 : f32
    %2 = vector.broadcast %cst : f32 to vector<2x128xf32>
    %c0_1 = arith.constant 0 : index
    %c0_2 = arith.constant 0 : index
    %3 = vector.load %arg2[%c0_1, %c0_2] : memref<400x1024xbf16, #tpu.memory_space<vmem>>, vector<400x128xbf16>
    %cst_3 = arith.constant dense<0.000000e+00> : vector<2x128xf32>
    %4 = tpu.matmul %1, %3, %cst_3 {dimension_numbers = #tpu.dot_dimension_numbers<[1], [0], [0], [1], [0, 0, 1, 1], [], []>} : vector<2x400xbf16>, vector<400x128xbf16>, vector<2x128xf32> -> vector<2x128xf32>
    %c0_4 = arith.constant 0 : index
    %c0_5 = arith.constant 0 : index
    %5 = vector.load %arg3[%c0_4, %c0_5] : memref<1x1024xf32, #tpu.memory_space<vmem>>, vector<1x128xf32>
    %6 = vector.broadcast %5 : vector<1x128xf32> to vector<2x128xf32>
    %7 = arith.addf %4, %6 : vector<2x128xf32>
    %cst_6 = arith.constant 0.000000e+00 : f32
    %8 = vector.broadcast %cst_6 : f32 to vector<2x128xf32>
    %9 = arith.maximumf %7, %8 : vector<2x128xf32>
    %10 = arith.truncf %9 : vector<2x128xf32> to vector<2x128xbf16>
    %c0_7 = arith.constant 0 : index
    %c0_8 = arith.constant 0 : index
    %11 = vector.load %arg4[%c0_7, %c0_8] : memref<1024x128xbf16, #tpu.memory_space<vmem>>, vector<128x128xbf16>
    %cst_9 = arith.constant dense<0.000000e+00> : vector<2x128xf32>
    %12 = tpu.matmul %10, %11, %cst_9 {dimension_numbers = #tpu.dot_dimension_numbers<[1], [0], [0], [1], [0, 0, 1, 1], [], []>} : vector<2x128xbf16>, vector<128x128xbf16>, vector<2x128xf32> -> vector<2x128xf32>
    %13 = arith.addf %2, %12 : vector<2x128xf32>
    %c0_10 = arith.constant 0 : index
    %c128 = arith.constant 128 : index
    %14 = vector.load %arg2[%c0_10, %c128] : memref<400x1024xbf16, #tpu.memory_space<vmem>>, vector<400x128xbf16>
    %cst_11 = arith.constant dense<0.000000e+00> : vector<2x128xf32>
    %15 = tpu.matmul %1, %14, %cst_11 {dimension_numbers = #tpu.dot_dimension_numbers<[1], [0], [0], [1], [0, 0, 1, 1], [], []>} : vector<2x400xbf16>, vector<400x128xbf16>, vector<2x128xf32> -> vector<2x128xf32>
    %c0_12 = arith.constant 0 : index
    %c128_13 = arith.constant 128 : index
    %16 = vector.load %arg3[%c0_12, %c128_13] : memref<1x1024xf32, #tpu.memory_space<vmem>>, vector<1x128xf32>
    %17 = vector.broadcast %16 : vector<1x128xf32> to vector<2x128xf32>
    %18 = arith.addf %15, %17 : vector<2x128xf32>
    %cst_14 = arith.constant 0.000000e+00 : f32
    %19 = vector.broadcast %cst_14 : f32 to vector<2x128xf32>
    %20 = arith.maximumf %18, %19 : vector<2x128xf32>
    %21 = arith.truncf %20 : vector<2x128xf32> to vector<2x128xbf16>
    %c128_15 = arith.constant 128 : index
    %c0_16 = arith.constant 0 : index
    %22 = vector.load %arg4[%c128_15, %c0_16] : memref<1024x128xbf16, #tpu.memory_space<vmem>>, vector<128x128xbf16>
    %cst_17 = arith.constant dense<0.000000e+00> : vector<2x128xf32>
    %23 = tpu.matmul %21, %22, %cst_17 {dimension_numbers = #tpu.dot_dimension_numbers<[1], [0], [0], [1], [0, 0, 1, 1], [], []>} : vector<2x128xbf16>, vector<128x128xbf16>, vector<2x128xf32> -> vector<2x128xf32>
    %24 = arith.addf %13, %23 : vector<2x128xf32>
    %c0_18 = arith.constant 0 : index
    %c256 = arith.constant 256 : index
    %25 = vector.load %arg2[%c0_18, %c256] : memref<400x1024xbf16, #tpu.memory_space<vmem>>, vector<400x128xbf16>
    %cst_19 = arith.constant dense<0.000000e+00> : vector<2x128xf32>
    %26 = tpu.matmul %1, %25, %cst_19 {dimension_numbers = #tpu.dot_dimension_numbers<[1], [0], [0], [1], [0, 0, 1, 1], [], []>} : vector<2x400xbf16>, vector<400x128xbf16>, vector<2x128xf32> -> vector<2x128xf32>
    %c0_20 = arith.constant 0 : index
    %c256_21 = arith.constant 256 : index
    %27 = vector.load %arg3[%c0_20, %c256_21] : memref<1x1024xf32, #tpu.memory_space<vmem>>, vector<1x128xf32>
    %28 = vector.broadcast %27 : vector<1x128xf32> to vector<2x128xf32>
    %29 = arith.addf %26, %28 : vector<2x128xf32>
    %cst_22 = arith.constant 0.000000e+00 : f32
    %30 = vector.broadcast %cst_22 : f32 to vector<2x128xf32>
    %31 = arith.maximumf %29, %30 : vector<2x128xf32>
    %32 = arith.truncf %31 : vector<2x128xf32> to vector<2x128xbf16>
    %c256_23 = arith.constant 256 : index
    %c0_24 = arith.constant 0 : index
    %33 = vector.load %arg4[%c256_23, %c0_24] : memref<1024x128xbf16, #tpu.memory_space<vmem>>, vector<128x128xbf16>
    %cst_25 = arith.constant dense<0.000000e+00> : vector<2x128xf32>
    %34 = tpu.matmul %32, %33, %cst_25 {dimension_numbers = #tpu.dot_dimension_numbers<[1], [0], [0], [1], [0, 0, 1, 1], [], []>} : vector<2x128xbf16>, vector<128x128xbf16>, vector<2x128xf32> -> vector<2x128xf32>
    %35 = arith.addf %24, %34 : vector<2x128xf32>
    %c0_26 = arith.constant 0 : index
    %c384 = arith.constant 384 : index
    %36 = vector.load %arg2[%c0_26, %c384] : memref<400x1024xbf16, #tpu.memory_space<vmem>>, vector<400x128xbf16>
    %cst_27 = arith.constant dense<0.000000e+00> : vector<2x128xf32>
    %37 = tpu.matmul %1, %36, %cst_27 {dimension_numbers = #tpu.dot_dimension_numbers<[1], [0], [0], [1], [0, 0, 1, 1], [], []>} : vector<2x400xbf16>, vector<400x128xbf16>, vector<2x128xf32> -> vector<2x128xf32>
    %c0_28 = arith.constant 0 : index
    %c384_29 = arith.constant 384 : index
    %38 = vector.load %arg3[%c0_28, %c384_29] : memref<1x1024xf32, #tpu.memory_space<vmem>>, vector<1x128xf32>
    %39 = vector.broadcast %38 : vector<1x128xf32> to vector<2x128xf32>
    %40 = arith.addf %37, %39 : vector<2x128xf32>
    %cst_30 = arith.constant 0.000000e+00 : f32
    %41 = vector.broadcast %cst_30 : f32 to vector<2x128xf32>
    %42 = arith.maximumf %40, %41 : vector<2x128xf32>
    %43 = arith.truncf %42 : vector<2x128xf32> to vector<2x128xbf16>
    %c384_31 = arith.constant 384 : index
    %c0_32 = arith.constant 0 : index
    %44 = vector.load %arg4[%c384_31, %c0_32] : memref<1024x128xbf16, #tpu.memory_space<vmem>>, vector<128x128xbf16>
    %cst_33 = arith.constant dense<0.000000e+00> : vector<2x128xf32>
    %45 = tpu.matmul %43, %44, %cst_33 {dimension_numbers = #tpu.dot_dimension_numbers<[1], [0], [0], [1], [0, 0, 1, 1], [], []>} : vector<2x128xbf16>, vector<128x128xbf16>, vector<2x128xf32> -> vector<2x128xf32>
    %46 = arith.addf %35, %45 : vector<2x128xf32>
    %c0_34 = arith.constant 0 : index
    %c512 = arith.constant 512 : index
    %47 = vector.load %arg2[%c0_34, %c512] : memref<400x1024xbf16, #tpu.memory_space<vmem>>, vector<400x128xbf16>
    %cst_35 = arith.constant dense<0.000000e+00> : vector<2x128xf32>
    %48 = tpu.matmul %1, %47, %cst_35 {dimension_numbers = #tpu.dot_dimension_numbers<[1], [0], [0], [1], [0, 0, 1, 1], [], []>} : vector<2x400xbf16>, vector<400x128xbf16>, vector<2x128xf32> -> vector<2x128xf32>
    %c0_36 = arith.constant 0 : index
    %c512_37 = arith.constant 512 : index
    %49 = vector.load %arg3[%c0_36, %c512_37] : memref<1x1024xf32, #tpu.memory_space<vmem>>, vector<1x128xf32>
    %50 = vector.broadcast %49 : vector<1x128xf32> to vector<2x128xf32>
    %51 = arith.addf %48, %50 : vector<2x128xf32>
    %cst_38 = arith.constant 0.000000e+00 : f32
    %52 = vector.broadcast %cst_38 : f32 to vector<2x128xf32>
    %53 = arith.maximumf %51, %52 : vector<2x128xf32>
    %54 = arith.truncf %53 : vector<2x128xf32> to vector<2x128xbf16>
    %c512_39 = arith.constant 512 : index
    %c0_40 = arith.constant 0 : index
    %55 = vector.load %arg4[%c512_39, %c0_40] : memref<1024x128xbf16, #tpu.memory_space<vmem>>, vector<128x128xbf16>
    %cst_41 = arith.constant dense<0.000000e+00> : vector<2x128xf32>
    %56 = tpu.matmul %54, %55, %cst_41 {dimension_numbers = #tpu.dot_dimension_numbers<[1], [0], [0], [1], [0, 0, 1, 1], [], []>} : vector<2x128xbf16>, vector<128x128xbf16>, vector<2x128xf32> -> vector<2x128xf32>
    %57 = arith.addf %46, %56 : vector<2x128xf32>
    %c0_42 = arith.constant 0 : index
    %c640 = arith.constant 640 : index
    %58 = vector.load %arg2[%c0_42, %c640] : memref<400x1024xbf16, #tpu.memory_space<vmem>>, vector<400x128xbf16>
    %cst_43 = arith.constant dense<0.000000e+00> : vector<2x128xf32>
    %59 = tpu.matmul %1, %58, %cst_43 {dimension_numbers = #tpu.dot_dimension_numbers<[1], [0], [0], [1], [0, 0, 1, 1], [], []>} : vector<2x400xbf16>, vector<400x128xbf16>, vector<2x128xf32> -> vector<2x128xf32>
    %c0_44 = arith.constant 0 : index
    %c640_45 = arith.constant 640 : index
    %60 = vector.load %arg3[%c0_44, %c640_45] : memref<1x1024xf32, #tpu.memory_space<vmem>>, vector<1x128xf32>
    %61 = vector.broadcast %60 : vector<1x128xf32> to vector<2x128xf32>
    %62 = arith.addf %59, %61 : vector<2x128xf32>
    %cst_46 = arith.constant 0.000000e+00 : f32
    %63 = vector.broadcast %cst_46 : f32 to vector<2x128xf32>
    %64 = arith.maximumf %62, %63 : vector<2x128xf32>
    %65 = arith.truncf %64 : vector<2x128xf32> to vector<2x128xbf16>
    %c640_47 = arith.constant 640 : index
    %c0_48 = arith.constant 0 : index
    %66 = vector.load %arg4[%c640_47, %c0_48] : memref<1024x128xbf16, #tpu.memory_space<vmem>>, vector<128x128xbf16>
    %cst_49 = arith.constant dense<0.000000e+00> : vector<2x128xf32>
    %67 = tpu.matmul %65, %66, %cst_49 {dimension_numbers = #tpu.dot_dimension_numbers<[1], [0], [0], [1], [0, 0, 1, 1], [], []>} : vector<2x128xbf16>, vector<128x128xbf16>, vector<2x128xf32> -> vector<2x128xf32>
    %68 = arith.addf %57, %67 : vector<2x128xf32>
    %c0_50 = arith.constant 0 : index
    %c768 = arith.constant 768 : index
    %69 = vector.load %arg2[%c0_50, %c768] : memref<400x1024xbf16, #tpu.memory_space<vmem>>, vector<400x128xbf16>
    %cst_51 = arith.constant dense<0.000000e+00> : vector<2x128xf32>
    %70 = tpu.matmul %1, %69, %cst_51 {dimension_numbers = #tpu.dot_dimension_numbers<[1], [0], [0], [1], [0, 0, 1, 1], [], []>} : vector<2x400xbf16>, vector<400x128xbf16>, vector<2x128xf32> -> vector<2x128xf32>
    %c0_52 = arith.constant 0 : index
    %c768_53 = arith.constant 768 : index
    %71 = vector.load %arg3[%c0_52, %c768_53] : memref<1x1024xf32, #tpu.memory_space<vmem>>, vector<1x128xf32>
    %72 = vector.broadcast %71 : vector<1x128xf32> to vector<2x128xf32>
    %73 = arith.addf %70, %72 : vector<2x128xf32>
    %cst_54 = arith.constant 0.000000e+00 : f32
    %74 = vector.broadcast %cst_54 : f32 to vector<2x128xf32>
    %75 = arith.maximumf %73, %74 : vector<2x128xf32>
    %76 = arith.truncf %75 : vector<2x128xf32> to vector<2x128xbf16>
    %c768_55 = arith.constant 768 : index
    %c0_56 = arith.constant 0 : index
    %77 = vector.load %arg4[%c768_55, %c0_56] : memref<1024x128xbf16, #tpu.memory_space<vmem>>, vector<128x128xbf16>
    %cst_57 = arith.constant dense<0.000000e+00> : vector<2x128xf32>
    %78 = tpu.matmul %76, %77, %cst_57 {dimension_numbers = #tpu.dot_dimension_numbers<[1], [0], [0], [1], [0, 0, 1, 1], [], []>} : vector<2x128xbf16>, vector<128x128xbf16>, vector<2x128xf32> -> vector<2x128xf32>
    %79 = arith.addf %68, %78 : vector<2x128xf32>
    %c0_58 = arith.constant 0 : index
    %c896 = arith.constant 896 : index
    %80 = vector.load %arg2[%c0_58, %c896] : memref<400x1024xbf16, #tpu.memory_space<vmem>>, vector<400x128xbf16>
    %cst_59 = arith.constant dense<0.000000e+00> : vector<2x128xf32>
    %81 = tpu.matmul %1, %80, %cst_59 {dimension_numbers = #tpu.dot_dimension_numbers<[1], [0], [0], [1], [0, 0, 1, 1], [], []>} : vector<2x400xbf16>, vector<400x128xbf16>, vector<2x128xf32> -> vector<2x128xf32>
    %c0_60 = arith.constant 0 : index
    %c896_61 = arith.constant 896 : index
    %82 = vector.load %arg3[%c0_60, %c896_61] : memref<1x1024xf32, #tpu.memory_space<vmem>>, vector<1x128xf32>
    %83 = vector.broadcast %82 : vector<1x128xf32> to vector<2x128xf32>
    %84 = arith.addf %81, %83 : vector<2x128xf32>
    %cst_62 = arith.constant 0.000000e+00 : f32
    %85 = vector.broadcast %cst_62 : f32 to vector<2x128xf32>
    %86 = arith.maximumf %84, %85 : vector<2x128xf32>
    %87 = arith.truncf %86 : vector<2x128xf32> to vector<2x128xbf16>
    %c896_63 = arith.constant 896 : index
    %c0_64 = arith.constant 0 : index
    %88 = vector.load %arg4[%c896_63, %c0_64] : memref<1024x128xbf16, #tpu.memory_space<vmem>>, vector<128x128xbf16>
    %cst_65 = arith.constant dense<0.000000e+00> : vector<2x128xf32>
    %89 = tpu.matmul %87, %88, %cst_65 {dimension_numbers = #tpu.dot_dimension_numbers<[1], [0], [0], [1], [0, 0, 1, 1], [], []>} : vector<2x128xbf16>, vector<128x128xbf16>, vector<2x128xf32> -> vector<2x128xf32>
    %90 = arith.addf %79, %89 : vector<2x128xf32>
    %c0_66 = arith.constant 0 : index
    %c0_67 = arith.constant 0 : index
    %91 = vector.load %arg5[%c0_66, %c0_67] : memref<1x128xf32, #tpu.memory_space<vmem>>, vector<1x128xf32>
    %92 = vector.broadcast %91 : vector<1x128xf32> to vector<2x128xf32>
    %93 = arith.addf %90, %92 : vector<2x128xf32>
    %cst_68 = arith.constant 0.000000e+00 : f32
    %94 = vector.broadcast %cst_68 : f32 to vector<2x128xf32>
    %95 = arith.maximumf %93, %94 : vector<2x128xf32>
    %96 = arith.truncf %95 : vector<2x128xf32> to vector<2x128xbf16>
    %c0_69 = arith.constant 0 : index
    %c0_70 = arith.constant 0 : index
    %97 = vector.load %arg6[%c0_69, %c0_70] : memref<128x128xbf16, #tpu.memory_space<vmem>>, vector<128x128xbf16>
    %cst_71 = arith.constant dense<0.000000e+00> : vector<2x128xf32>
    %98 = tpu.matmul %96, %97, %cst_71 {dimension_numbers = #tpu.dot_dimension_numbers<[1], [0], [0], [1], [0, 0, 1, 1], [], []>} : vector<2x128xbf16>, vector<128x128xbf16>, vector<2x128xf32> -> vector<2x128xf32>
    %c0_72 = arith.constant 0 : index
    %c0_73 = arith.constant 0 : index
    %99 = vector.load %arg7[%c0_72, %c0_73] : memref<1x128xf32, #tpu.memory_space<vmem>>, vector<1x128xf32>
    %100 = vector.broadcast %99 : vector<1x128xf32> to vector<2x128xf32>
    %101 = arith.addf %98, %100 : vector<2x128xf32>
    %c0_74 = arith.constant 0 : index
    %c0_75 = arith.constant 0 : index
    %102 = vector.load %arg8[%c0_74, %c0_75] : memref<2x128xf32, #tpu.memory_space<vmem>>, vector<2x128xf32>
    tpu.vector_store %arg8[%c0_74, %c0_75], %101 {strides = array<i32>} : memref<2x128xf32, #tpu.memory_space<vmem>>, vector<2x128xf32>,
    return
  }
  func.func @transform_0(%arg0: i32) -> (i32, i32) {
    %c0_i32 = arith.constant 0 : i32
    %c0_i32_0 = arith.constant 0 : i32
    return %arg0, %c0_i32 : i32, i32
  }
  func.func @transform_1(%arg0: i32) -> (i32, i32) {
    %c0_i32 = arith.constant 0 : i32
    %c0_i32_0 = arith.constant 0 : i32
    %c0_i32_1 = arith.constant 0 : i32
    return %c0_i32, %c0_i32_0 : i32, i32
  }
  func.func @transform_2(%arg0: i32) -> (i32, i32) {
    %c0_i32 = arith.constant 0 : i32
    %c0_i32_0 = arith.constant 0 : i32
    %c0_i32_1 = arith.constant 0 : i32
    return %c0_i32, %c0_i32_0 : i32, i32
  }
  func.func @transform_3(%arg0: i32) -> (i32, i32) {
    %c0_i32 = arith.constant 0 : i32
    %c0_i32_0 = arith.constant 0 : i32
    %c0_i32_1 = arith.constant 0 : i32
    return %c0_i32, %c0_i32_0 : i32, i32
  }
  func.func @transform_4(%arg0: i32) -> (i32, i32) {
    %c0_i32 = arith.constant 0 : i32
    %c0_i32_0 = arith.constant 0 : i32
    %c0_i32_1 = arith.constant 0 : i32
    return %c0_i32, %c0_i32_0 : i32, i32
  }
  func.func @transform_5(%arg0: i32) -> (i32, i32) {
    %c0_i32 = arith.constant 0 : i32
    %c0_i32_0 = arith.constant 0 : i32
    %c0_i32_1 = arith.constant 0 : i32
    return %c0_i32, %c0_i32_0 : i32, i32
  }
  func.func @transform_6(%arg0: i32) -> (i32, i32) {
    %c0_i32 = arith.constant 0 : i32
    %c0_i32_0 = arith.constant 0 : i32
    %c0_i32_1 = arith.constant 0 : i32
    return %c0_i32, %c0_i32_0 : i32, i32
  }
  func.func @transform_7(%arg0: i32) -> (i32, i32) {
    %c0_i32 = arith.constant 0 : i32
    %c0_i32_0 = arith.constant 0 : i32
    return %arg0, %c0_i32 : i32, i32
  }
}

</mosaic_0001>

<llo_original>
// kernel: _lambda_.1
$region0: #{_lambda_.1}
  #allocation0 [shape = 'u32[]', space=smem, size = 0x4, offset = 0x4, fixed_abs, tag = 'smem constant byte address 0x4 - core index']
  #allocation1 [shape = 'u32[72,128]{1,0:T(1,128)}', space=vmem, size = 0x9000, scoped, tag = 'internal scratch']
  %s0 = inlined_call_operand.vmem [shape: f32[2,400], index: 0, kind: input, shape index: {}]
  %s1 = inlined_call_operand.hbm [shape: bf16[400,1024], index: 1, kind: input, shape index: {}]
  %s2 = inlined_call_operand.vmem [shape: f32[1,1024], index: 2, kind: input, shape index: {}]
  %s3 = inlined_call_operand.hbm [shape: bf16[1024,128], index: 3, kind: input, shape index: {}]
  %s4 = inlined_call_operand.vmem [shape: f32[1,128], index: 4, kind: input, shape index: {}]
  %s5 = inlined_call_operand.vmem [shape: bf16[128,128], index: 5, kind: input, shape index: {}]
  %s6 = inlined_call_operand.vmem [shape: f32[1,128], index: 6, kind: input, shape index: {}]
  %s7 = inlined_call_operand.hbm [shape: f32[2,128], index: 7, kind: output, shape index: {}]
  %s8 = sld [smem:[#allocation0]]
  $region46: #{_lambda_.1} parent=0
    _
  %s10 = ssub.s32 1, %s8
  %s11 = scalar_select 0, %s10, %s8
  $region1: #{_lambda_.1} parent=0
    #allocation2 [shape = 'u8[819200]{0}', space=vmem, size = 0xc8000, scoped, tag = 'input window, operand 1, single buffered']
    #allocation3 [shape = 's32[1]{0}', space=sflag, size = 0x4, scoped, tag = 'scoped memory for _lambda_.1']
    #allocation4 [shape = 's32[1]{0}', space=sflag, size = 0x4, scoped, tag = 'scoped memory for _lambda_.1']
    #allocation5 [shape = 'u8[262144]{0}', space=vmem, size = 0x40000, scoped, tag = 'input window, operand 3, single buffered']
    #allocation6 [shape = 's32[1]{0}', space=sflag, size = 0x4, scoped, tag = 'scoped memory for _lambda_.1']
    #allocation7 [shape = 'u8[1024]{0}', space=vmem, size = 0x400, scoped, tag = 'output window, operand 0, single buffered']
    %12 = vsyncpa [#allocation3], 0
    %13 = vsyncpa [#allocation6], 0
    %14 = vsyncpa [#allocation4], 0
    // Predicated region
    $region2: #{_lambda_.1} parent=1 // pred_check
      _
    $region3: #{_lambda_.1} parent=1 // pred_check_branch
      %16 = sbr.rel (0) target = $region5
    $region4: #{_lambda_.1} parent=1 // pred_region
      _
    $region5: #{_lambda_.1} parent=1 // pred_fallthru
      _
    // Predicated region
    $region6: #{_lambda_.1} parent=1 // pred_check
      _
    $region7: #{_lambda_.1} parent=1 // pred_check_branch
      %18 = sbr.rel (0) target = $region9
    $region8: #{_lambda_.1} parent=1 // pred_region
      %20 = vsyncadd [#allocation3], 0
      %s21 = sshll.u32 %s1, 4
      %s22 = int_to_ptr.hbm [resolvable:$true] %s21
      %s23 = sshll.u32 [#allocation2], 4
      %s24 = int_to_ptr.vmem [resolvable:$true] %s23
      %29 = dma.hbm_to_vmem [thread:$0]  %s22, 25600, %s24, [#allocation3], 512, 512, 32
    $region9: #{_lambda_.1} parent=1 // pred_fallthru
      _
    // Predicated region
    $region10: #{_lambda_.1} parent=1 // pred_check
      _
    $region11: #{_lambda_.1} parent=1 // pred_check_branch
      %31 = sbr.rel (0) target = $region13
    $region12: #{_lambda_.1} parent=1 // pred_region
      _
    $region13: #{_lambda_.1} parent=1 // pred_fallthru
      _
    // Predicated region
    $region14: #{_lambda_.1} parent=1 // pred_check
      _
    $region15: #{_lambda_.1} parent=1 // pred_check_branch
      %33 = sbr.rel (0) target = $region17
    $region16: #{_lambda_.1} parent=1 // pred_region
      %35 = vsyncadd [#allocation6], 0
      %s36 = sshll.u32 %s3, 4
      %s37 = int_to_ptr.hbm [resolvable:$true] %s36
      %s38 = sshll.u32 [#allocation5], 4
      %s39 = int_to_ptr.vmem [resolvable:$true] %s38
      %44 = dma.hbm_to_vmem [thread:$0]  %s37, 8192, %s39, [#allocation6], 64, 64, 4
    $region17: #{_lambda_.1} parent=1 // pred_fallthru
      _
    // Predicated region
    $region18: #{_lambda_.1} parent=1 // pred_check
      _
    $region19: #{_lambda_.1} parent=1 // pred_check_branch
      %46 = sbr.rel (0) target = $region21
    $region20: #{_lambda_.1} parent=1 // pred_region
      _
    $region21: #{_lambda_.1} parent=1 // pred_fallthru
      _
    // Predicated region
    $region22: #{_lambda_.1} parent=1 // pred_check
      _
    $region23: #{_lambda_.1} parent=1 // pred_check_branch
      %48 = sbr.rel (0) target = $region25
    $region24: #{_lambda_.1} parent=1 // pred_region
      _
    $region25: #{_lambda_.1} parent=1 // pred_fallthru
      _
    // Predicated region
    $region26: #{_lambda_.1} parent=1 // pred_check
      _
    $region27: #{_lambda_.1} parent=1 // pred_check_branch
      %50 = sbr.rel (0) target = $region29
    $region28: #{_lambda_.1} parent=1 // pred_region
      _
    $region29: #{_lambda_.1} parent=1 // pred_fallthru
      _
    // Predicated region
    $region30: #{_lambda_.1} parent=1 // pred_check
      _
    $region31: #{_lambda_.1} parent=1 // pred_check_branch
      %52 = sbr.rel (0) target = $region33
    $region32: #{_lambda_.1} parent=1 // pred_region
      %54 = dma.done [#allocation3], 25600
    $region33: #{_lambda_.1} parent=1 // pred_fallthru
      _
    // Predicated region
    $region34: #{_lambda_.1} parent=1 // pred_check
      _
    $region35: #{_lambda_.1} parent=1 // pred_check_branch
      %56 = sbr.rel (0) target = $region37
    $region36: #{_lambda_.1} parent=1 // pred_region
      %58 = dma.done [#allocation6], 8192
    $region37: #{_lambda_.1} parent=1 // pred_fallthru
      _
    %v60 = vld [vmem:[%s0] sm:$0xff]
    %62 = vst [vmem:[#allocation1] ss:$4 sm:$0xff] %v60
    %v63 = vld.sshfl [vmem:[#allocation1] sm:$0xff pattern:$0x73625140]
    %v64 = vld.sshfl [vmem:[#allocation1 + $0x8] sm:$0xff pattern:$0x73625140]
    %v65 = vld.sshfl [vmem:[#allocation1 + $0x10] sm:$0xff pattern:$0x73625140]
    %v66 = vld.sshfl [vmem:[#allocation1 + $0x18] sm:$0xff pattern:$0x73625140]
    %v71 = vpack.c.bf16 %v63, %v63
    %v72 = vpack.c.bf16 %v64, %v64
    %v73 = vpack.c.bf16 %v65, %v65
    %v74 = vpack.c.bf16 %v66, %v66
    %v75 = vld [vmem:[#allocation2] sm:$0xf]
    %v76 = vld [vmem:[#allocation2 + $0x20] sm:$0xf]
    %v77 = vld [vmem:[#allocation2 + $0x40] sm:$0xf]
    %v78 = vld [vmem:[#allocation2 + $0x60] sm:$0xf]
    %v79 = vld [vmem:[#allocation2 + $0x80] sm:$0xf]
    %v80 = vld [vmem:[#allocation2 + $0xa0] sm:$0xf]
    %v81 = vld [vmem:[#allocation2 + $0xc0] sm:$0xf]
    %v82 = vld [vmem:[#allocation2 + $0xe0] sm:$0xf]
    %v83 = vld [vmem:[#allocation2 + $0x100] sm:$0xf]
    %v84 = vld [vmem:[#allocation2 + $0x120] sm:$0xf]
    %v85 = vld [vmem:[#allocation2 + $0x140] sm:$0xf]
    %v86 = vld [vmem:[#allocation2 + $0x160] sm:$0xf]
    %v87 = vld [vmem:[#allocation2 + $0x180] sm:$0xf]
    %v88 = vld [vmem:[#allocation2 + $0x1a0] sm:$0xf]
    %v89 = vld [vmem:[#allocation2 + $0x1c0] sm:$0xf]
    %v90 = vld [vmem:[#allocation2 + $0x1e0] sm:$0xf]
    %v91 = vld [vmem:[#allocation2 + $0x200] sm:$0xf]
    %v92 = vld [vmem:[#allocation2 + $0x220] sm:$0xf]
    %v93 = vld [vmem:[#allocation2 + $0x240] sm:$0xf]
    %v94 = vld [vmem:[#allocation2 + $0x260] sm:$0xf]
    %v95 = vld [vmem:[#allocation2 + $0x280] sm:$0xf]
    %v96 = vld [vmem:[#allocation2 + $0x2a0] sm:$0xf]
    %v97 = vld [vmem:[#allocation2 + $0x2c0] sm:$0xf]
    %v98 = vld [vmem:[#allocation2 + $0x2e0] sm:$0xf]
    %v99 = vld [vmem:[#allocation2 + $0x300] sm:$0xf]
    %v100 = vld [vmem:[#allocation2 + $0x320] sm:$0xf]
    %v101 = vld [vmem:[#allocation2 + $0x340] sm:$0xf]
    %v102 = vld [vmem:[#allocation2 + $0x360] sm:$0xf]
    %v103 = vld [vmem:[#allocation2 + $0x380] sm:$0xf]
    %v104 = vld [vmem:[#allocation2 + $0x3a0] sm:$0xf]
    %v105 = vld [vmem:[#allocation2 + $0x3c0] sm:$0xf]
    %v106 = vld [vmem:[#allocation2 + $0x3e0] sm:$0xf]
    %v107 = vld [vmem:[#allocation2 + $0x400] sm:$0xf]
    %v108 = vld [vmem:[#allocation2 + $0x420] sm:$0xf]
    %v109 = vld [vmem:[#allocation2 + $0x440] sm:$0xf]
    %v110 = vld [vmem:[#allocation2 + $0x460] sm:$0xf]
    %v111 = vld [vmem:[#allocation2 + $0x480] sm:$0xf]
    %v112 = vld [vmem:[#allocation2 + $0x4a0] sm:$0xf]
    %v113 = vld [vmem:[#allocation2 + $0x4c0] sm:$0xf]
    %v114 = vld [vmem:[#allocation2 + $0x4e0] sm:$0xf]
    %v115 = vld [vmem:[#allocation2 + $0x500] sm:$0xf]
    %v116 = vld [vmem:[#allocation2 + $0x520] sm:$0xf]
    %v117 = vld [vmem:[#allocation2 + $0x540] sm:$0xf]
    %v118 = vld [vmem:[#allocation2 + $0x560] sm:$0xf]
    %v119 = vld [vmem:[#allocation2 + $0x580] sm:$0xf]
    %v120 = vld [vmem:[#allocation2 + $0x5a0] sm:$0xf]
    %v121 = vld [vmem:[#allocation2 + $0x5c0] sm:$0xf]
    %v122 = vld [vmem:[#allocation2 + $0x5e0] sm:$0xf]
    %v123 = vld [vmem:[#allocation2 + $0x600] sm:$0xf]
    %v124 = vld [vmem:[#allocation2 + $0x620] sm:$0xf]
    %v125 = vld [vmem:[%s2] sm:$0x1]
    %v127 = vperm.slane %v125, 0
    %v179 = vunpack.c.l.b16 %v75
    %v180 = vunpack.c.l.b16 %v76
    %v181 = vunpack.c.l.b16 %v77
    %v182 = vunpack.c.l.b16 %v78
    %v183 = vunpack.c.l.b16 %v79
    %v184 = vunpack.c.l.b16 %v80
    %v185 = vunpack.c.l.b16 %v81
    %v186 = vunpack.c.l.b16 %v82
    %v187 = vunpack.c.l.b16 %v83
    %v188 = vunpack.c.l.b16 %v84
    %v189 = vunpack.c.l.b16 %v85
    %v190 = vunpack.c.l.b16 %v86
    %v191 = vunpack.c.l.b16 %v87
    %v192 = vunpack.c.l.b16 %v88
    %v193 = vunpack.c.l.b16 %v89
    %v194 = vunpack.c.l.b16 %v90
    %v195 = vunpack.c.l.b16 %v91
    %v196 = vunpack.c.l.b16 %v92
    %v197 = vunpack.c.l.b16 %v93
    %v198 = vunpack.c.l.b16 %v94
    %v199 = vunpack.c.l.b16 %v95
    %v200 = vunpack.c.l.b16 %v96
    %v201 = vunpack.c.l.b16 %v97
    %v202 = vunpack.c.l.b16 %v98
    %v203 = vunpack.c.l.b16 %v99
    %v204 = vunpack.c.l.b16 %v100
    %v205 = vunpack.c.l.b16 %v101
    %v206 = vunpack.c.l.b16 %v102
    %v207 = vunpack.c.l.b16 %v103
    %v208 = vunpack.c.l.b16 %v104
    %v209 = vunpack.c.l.b16 %v105
    %v210 = vunpack.c.l.b16 %v106
    %v211 = vunpack.c.l.b16 %v107
    %v212 = vunpack.c.l.b16 %v108
    %v213 = vunpack.c.l.b16 %v109
    %v214 = vunpack.c.l.b16 %v110
    %v215 = vunpack.c.l.b16 %v111
    %v216 = vunpack.c.l.b16 %v112
    %v217 = vunpack.c.l.b16 %v113
    %v218 = vunpack.c.l.b16 %v114
    %v219 = vunpack.c.l.b16 %v115
    %v220 = vunpack.c.l.b16 %v116
    %v221 = vunpack.c.l.b16 %v117
    %v222 = vunpack.c.l.b16 %v118
    %v223 = vunpack.c.l.b16 %v119
    %v224 = vunpack.c.l.b16 %v120
    %v225 = vunpack.c.l.b16 %v121
    %v226 = vunpack.c.l.b16 %v122
    %v227 = vunpack.c.l.b16 %v123
    %v228 = vunpack.c.l.b16 %v124
    %v229 = vpack.c.b16 %v180, %v179
    %v230 = vpack.c.b16 %v182, %v181
    %v231 = vpack.c.b16 %v184, %v183
    %v232 = vpack.c.b16 %v186, %v185
    %v233 = vpack.c.b16 %v188, %v187
    %v234 = vpack.c.b16 %v190, %v189
    %v235 = vpack.c.b16 %v192, %v191
    %v236 = vpack.c.b16 %v194, %v193
    %v237 = vpack.c.b16 %v196, %v195
    %v238 = vpack.c.b16 %v198, %v197
    %v239 = vpack.c.b16 %v200, %v199
    %v240 = vpack.c.b16 %v202, %v201
    %v241 = vpack.c.b16 %v204, %v203
    %v242 = vpack.c.b16 %v206, %v205
    %v243 = vpack.c.b16 %v208, %v207
    %v244 = vpack.c.b16 %v210, %v209
    %v245 = vpack.c.b16 %v212, %v211
    %v246 = vpack.c.b16 %v214, %v213
    %v247 = vpack.c.b16 %v216, %v215
    %v248 = vpack.c.b16 %v218, %v217
    %v249 = vpack.c.b16 %v220, %v219
    %v250 = vpack.c.b16 %v222, %v221
    %v251 = vpack.c.b16 %v224, %v223
    %v252 = vpack.c.b16 %v226, %v225
    %v253 = vpack.c.b16 %v228, %v227
    %vm279 = vcmask 130048
    %v281 = vsel %vm279, %v74, 0
    %283 = vmatpush.bf16.msra.mxu0 %v236
    %284 = vmatpush.bf16.msra.mxu0 %v235
    %285 = vmatpush.bf16.msra.mxu0 %v234
    %286 = vmatpush.bf16.msra.mxu0 %v233
    %287 = vmatpush.bf16.msra.mxu0 %v232
    %288 = vmatpush.bf16.msra.mxu0 %v231
    %289 = vmatpush.bf16.msra.mxu0 %v230
    %290 = vmatpush.bf16.msra.mxu0 %v229
    %291 = vmatmul.bf16.gmra.mxu0 %v71
    %v292 = vpop.f32.mrf.mxu0
    %v293 = vadd.f32 %v127, %v292
    %v294 = vpop.f32.mrf.mxu0
    %295 = vdwg.mxu0
    %296 = vmatpush.bf16.msra.mxu0 %v244
    %297 = vmatpush.bf16.msra.mxu0 %v243
    %298 = vmatpush.bf16.msra.mxu0 %v242
    %299 = vmatpush.bf16.msra.mxu0 %v241
    %300 = vmatpush.bf16.msra.mxu0 %v240
    %301 = vmatpush.bf16.msra.mxu0 %v239
    %302 = vmatpush.bf16.msra.mxu0 %v238
    %303 = vmatpush.bf16.msra.mxu0 %v237
    %304 = vmatmul.bf16.gmra.mxu0 %v72
    %v305 = vpop.f32.mrf.mxu0
    %v306 = vadd.f32 %v293, %v305
    %v307 = vpop.f32.mrf.mxu0
    %308 = vdwg.mxu0
    %309 = vmatpush.bf16.msra.mxu0 %v252
    %310 = vmatpush.bf16.msra.mxu0 %v251
    %311 = vmatpush.bf16.msra.mxu0 %v250
    %312 = vmatpush.bf16.msra.mxu0 %v249
    %313 = vmatpush.bf16.msra.mxu0 %v248
    %314 = vmatpush.bf16.msra.mxu0 %v247
    %315 = vmatpush.bf16.msra.mxu0 %v246
    %316 = vmatpush.bf16.msra.mxu0 %v245
    %317 = vmatmul.bf16.gmra.mxu0 %v73
    %v318 = vpop.f32.mrf.mxu0
    %v319 = vadd.f32 %v306, %v318
    %v320 = vpop.f32.mrf.mxu0
    %321 = vdwg.mxu0
    %322 = vmatpush.bf16.msra.mxu0 0
    %323 = vmatpush.bf16.msra.mxu0 0
    %324 = vmatpush.bf16.msra.mxu0 0
    %325 = vmatpush.bf16.msra.mxu0 0
    %326 = vmatpush.bf16.msra.mxu0 0
    %327 = vmatpush.bf16.msra.mxu0 0
    %328 = vmatpush.bf16.msra.mxu0 0
    %329 = vmatpush.bf16.msra.mxu0 %v253
    %330 = vmatmul.bf16.gmra.mxu0 %v281
    %v331 = vpop.f32.mrf.mxu0
    %v332 = vadd.f32 %v319, %v331
    %v333 = vpop.f32.mrf.mxu0
    %334 = vdwg.mxu0
    %v335 = vmax.f32 %v332, 0.0
    %v336 = vpack.c.bf16 %v335, %v335
    %v337 = vld [vmem:[#allocation5] sm:$0xf]
    %v338 = vld [vmem:[#allocation5 + $0x4] sm:$0xf]
    %v339 = vld [vmem:[#allocation5 + $0x8] sm:$0xf]
    %v340 = vld [vmem:[#allocation5 + $0xc] sm:$0xf]
    %v341 = vld [vmem:[#allocation5 + $0x10] sm:$0xf]
    %v342 = vld [vmem:[#allocation5 + $0x14] sm:$0xf]
    %v343 = vld [vmem:[#allocation5 + $0x18] sm:$0xf]
    %v344 = vld [vmem:[#allocation5 + $0x1c] sm:$0xf]
    %v345 = vld [vmem:[#allocation5 + $0x20] sm:$0xf]
    %v346 = vld [vmem:[#allocation5 + $0x24] sm:$0xf]
    %v347 = vld [vmem:[#allocation5 + $0x28] sm:$0xf]
    %v348 = vld [vmem:[#allocation5 + $0x2c] sm:$0xf]
    %v349 = vld [vmem:[#allocation5 + $0x30] sm:$0xf]
    %v350 = vld [vmem:[#allocation5 + $0x34] sm:$0xf]
    %v351 = vld [vmem:[#allocation5 + $0x38] sm:$0xf]
    %v352 = vld [vmem:[#allocation5 + $0x3c] sm:$0xf]
    %v353 = vld [vmem:[#allocation2 + $0x4] sm:$0xf]
    %v354 = vld [vmem:[#allocation2 + $0x24] sm:$0xf]
    %v355 = vld [vmem:[#allocation2 + $0x44] sm:$0xf]
    %v356 = vld [vmem:[#allocation2 + $0x64] sm:$0xf]
    %v357 = vld [vmem:[#allocation2 + $0x84] sm:$0xf]
    %v358 = vld [vmem:[#allocation2 + $0xa4] sm:$0xf]
    %v359 = vld [vmem:[#allocation2 + $0xc4] sm:$0xf]
    %v360 = vld [vmem:[#allocation2 + $0xe4] sm:$0xf]
    %v361 = vld [vmem:[#allocation2 + $0x104] sm:$0xf]
    %v362 = vld [vmem:[#allocation2 + $0x124] sm:$0xf]
    %v363 = vld [vmem:[#allocation2 + $0x144] sm:$0xf]
    %v364 = vld [vmem:[#allocation2 + $0x164] sm:$0xf]
    %v365 = vld [vmem:[#allocation2 + $0x184] sm:$0xf]
    %v366 = vld [vmem:[#allocation2 + $0x1a4] sm:$0xf]
    %v367 = vld [vmem:[#allocation2 + $0x1c4] sm:$0xf]
    %v368 = vld [vmem:[#allocation2 + $0x1e4] sm:$0xf]
    %v369 = vld [vmem:[#allocation2 + $0x204] sm:$0xf]
    %v370 = vld [vmem:[#allocation2 + $0x224] sm:$0xf]
    %v371 = vld [vmem:[#allocation2 + $0x244] sm:$0xf]
    %v372 = vld [vmem:[#allocation2 + $0x264] sm:$0xf]
    %v373 = vld [vmem:[#allocation2 + $0x284] sm:$0xf]
    %v374 = vld [vmem:[#allocation2 + $0x2a4] sm:$0xf]
    %v375 = vld [vmem:[#allocation2 + $0x2c4] sm:$0xf]
    %v376 = vld [vmem:[#allocation2 + $0x2e4] sm:$0xf]
    %v377 = vld [vmem:[#allocation2 + $0x304] sm:$0xf]
    %v378 = vld [vmem:[#allocation2 + $0x324] sm:$0xf]
    %v379 = vld [vmem:[#allocation2 + $0x344] sm:$0xf]
    %v380 = vld [vmem:[#allocation2 + $0x364] sm:$0xf]
    %v381 = vld [vmem:[#allocation2 + $0x384] sm:$0xf]
    %v382 = vld [vmem:[#allocation2 + $0x3a4] sm:$0xf]
    %v383 = vld [vmem:[#allocation2 + $0x3c4] sm:$0xf]
    %v384 = vld [vmem:[#allocation2 + $0x3e4] sm:$0xf]
    %v385 = vld [vmem:[#allocation2 + $0x404] sm:$0xf]
    %v386 = vld [vmem:[#allocation2 + $0x424] sm:$0xf]
    %v387 = vld [vmem:[#allocation2 + $0x444] sm:$0xf]
    %v388 = vld [vmem:[#allocation2 + $0x464] sm:$0xf]
    %v389 = vld [vmem:[#allocation2 + $0x484] sm:$0xf]
    %v390 = vld [vmem:[#allocation2 + $0x4a4] sm:$0xf]
    %v391 = vld [vmem:[#allocation2 + $0x4c4] sm:$0xf]
    %v392 = vld [vmem:[#allocation2 + $0x4e4] sm:$0xf]
    %v393 = vld [vmem:[#allocation2 + $0x504] sm:$0xf]
    %v394 = vld [vmem:[#allocation2 + $0x524] sm:$0xf]
    %v395 = vld [vmem:[#allocation2 + $0x544] sm:$0xf]
    %v396 = vld [vmem:[#allocation2 + $0x564] sm:$0xf]
    %v397 = vld [vmem:[#allocation2 + $0x584] sm:$0xf]
    %v398 = vld [vmem:[#allocation2 + $0x5a4] sm:$0xf]
    %v399 = vld [vmem:[#allocation2 + $0x5c4] sm:$0xf]
    %v400 = vld [vmem:[#allocation2 + $0x5e4] sm:$0xf]
    %v401 = vld [vmem:[#allocation2 + $0x604] sm:$0xf]
    %v402 = vld [vmem:[#allocation2 + $0x624] sm:$0xf]
    %v403 = vld [vmem:[%s2 + $0x1] sm:$0x1]
    %v405 = vperm.slane %v403, 0
    %v457 = vunpack.c.l.b16 %v353
    %v458 = vunpack.c.l.b16 %v354
    %v459 = vunpack.c.l.b16 %v355
    %v460 = vunpack.c.l.b16 %v356
    %v461 = vunpack.c.l.b16 %v357
    %v462 = vunpack.c.l.b16 %v358
    %v463 = vunpack.c.l.b16 %v359
    %v464 = vunpack.c.l.b16 %v360
    %v465 = vunpack.c.l.b16 %v361
    %v466 = vunpack.c.l.b16 %v362
    %v467 = vunpack.c.l.b16 %v363
    %v468 = vunpack.c.l.b16 %v364
    %v469 = vunpack.c.l.b16 %v365
    %v470 = vunpack.c.l.b16 %v366
    %v471 = vunpack.c.l.b16 %v367
    %v472 = vunpack.c.l.b16 %v368
    %v473 = vunpack.c.l.b16 %v369
    %v474 = vunpack.c.l.b16 %v370
    %v475 = vunpack.c.l.b16 %v371
    %v476 = vunpack.c.l.b16 %v372
    %v477 = vunpack.c.l.b16 %v373
    %v478 = vunpack.c.l.b16 %v374
    %v479 = vunpack.c.l.b16 %v375
    %v480 = vunpack.c.l.b16 %v376
    %v481 = vunpack.c.l.b16 %v377
    %v482 = vunpack.c.l.b16 %v378
    %v483 = vunpack.c.l.b16 %v379
    %v484 = vunpack.c.l.b16 %v380
    %v485 = vunpack.c.l.b16 %v381
    %v486 = vunpack.c.l.b16 %v382
    %v487 = vunpack.c.l.b16 %v383
    %v488 = vunpack.c.l.b16 %v384
    %v489 = vunpack.c.l.b16 %v385
    %v490 = vunpack.c.l.b16 %v386
    %v491 = vunpack.c.l.b16 %v387
    %v492 = vunpack.c.l.b16 %v388
    %v493 = vunpack.c.l.b16 %v389
    %v494 = vunpack.c.l.b16 %v390
    %v495 = vunpack.c.l.b16 %v391
    %v496 = vunpack.c.l.b16 %v392
    %v497 = vunpack.c.l.b16 %v393
    %v498 = vunpack.c.l.b16 %v394
    %v499 = vunpack.c.l.b16 %v395
    %v500 = vunpack.c.l.b16 %v396
    %v501 = vunpack.c.l.b16 %v397
    %v502 = vunpack.c.l.b16 %v398
    %v503 = vunpack.c.l.b16 %v399
    %v504 = vunpack.c.l.b16 %v400
    %v505 = vunpack.c.l.b16 %v401
    %v506 = vunpack.c.l.b16 %v402
    %v507 = vpack.c.b16 %v458, %v457
    %v508 = vpack.c.b16 %v460, %v459
    %v509 = vpack.c.b16 %v462, %v461
    %v510 = vpack.c.b16 %v464, %v463
    %v511 = vpack.c.b16 %v466, %v465
    %v512 = vpack.c.b16 %v468, %v467
    %v513 = vpack.c.b16 %v470, %v469
    %v514 = vpack.c.b16 %v472, %v471
    %v515 = vpack.c.b16 %v474, %v473
    %v516 = vpack.c.b16 %v476, %v475
    %v517 = vpack.c.b16 %v478, %v477
    %v518 = vpack.c.b16 %v480, %v479
    %v519 = vpack.c.b16 %v482, %v481
    %v520 = vpack.c.b16 %v484, %v483
    %v521 = vpack.c.b16 %v486, %v485
    %v522 = vpack.c.b16 %v488, %v487
    %v523 = vpack.c.b16 %v490, %v489
    %v524 = vpack.c.b16 %v492, %v491
    %v525 = vpack.c.b16 %v494, %v493
    %v526 = vpack.c.b16 %v496, %v495
    %v527 = vpack.c.b16 %v498, %v497
    %v528 = vpack.c.b16 %v500, %v499
    %v529 = vpack.c.b16 %v502, %v501
    %v530 = vpack.c.b16 %v504, %v503
    %v531 = vpack.c.b16 %v506, %v505
    %557 = vmatpush.bf16.msra.mxu0 %v514
    %558 = vmatpush.bf16.msra.mxu0 %v513
    %559 = vmatpush.bf16.msra.mxu0 %v512
    %560 = vmatpush.bf16.msra.mxu0 %v511
    %561 = vmatpush.bf16.msra.mxu0 %v510
    %562 = vmatpush.bf16.msra.mxu0 %v509
    %563 = vmatpush.bf16.msra.mxu0 %v508
    %564 = vmatpush.bf16.msra.mxu0 %v507
    %565 = vmatmul.bf16.gmra.mxu0 %v71
    %v566 = vpop.f32.mrf.mxu0
    %v567 = vadd.f32 %v405, %v566
    %v568 = vpop.f32.mrf.mxu0
    %569 = vdwg.mxu0
    %570 = vmatpush.bf16.msra.mxu0 %v522
    %571 = vmatpush.bf16.msra.mxu0 %v521
    %572 = vmatpush.bf16.msra.mxu0 %v520
    %573 = vmatpush.bf16.msra.mxu0 %v519
    %574 = vmatpush.bf16.msra.mxu0 %v518
    %575 = vmatpush.bf16.msra.mxu0 %v517
    %576 = vmatpush.bf16.msra.mxu0 %v516
    %577 = vmatpush.bf16.msra.mxu0 %v515
    %578 = vmatmul.bf16.gmra.mxu0 %v72
    %v579 = vpop.f32.mrf.mxu0
    %v580 = vadd.f32 %v567, %v579
    %v581 = vpop.f32.mrf.mxu0
    %582 = vdwg.mxu0
    %583 = vmatpush.bf16.msra.mxu0 %v530
    %584 = vmatpush.bf16.msra.mxu0 %v529
    %585 = vmatpush.bf16.msra.mxu0 %v528
    %586 = vmatpush.bf16.msra.mxu0 %v527
    %587 = vmatpush.bf16.msra.mxu0 %v526
    %588 = vmatpush.bf16.msra.mxu0 %v525
    %589 = vmatpush.bf16.msra.mxu0 %v524
    %590 = vmatpush.bf16.msra.mxu0 %v523
    %591 = vmatmul.bf16.gmra.mxu0 %v73
    %v592 = vpop.f32.mrf.mxu0
    %v593 = vadd.f32 %v580, %v592
    %v594 = vpop.f32.mrf.mxu0
    %595 = vdwg.mxu0
    %596 = vmatpush.bf16.msra.mxu0 0
    %597 = vmatpush.bf16.msra.mxu0 0
    %598 = vmatpush.bf16.msra.mxu0 0
    %599 = vmatpush.bf16.msra.mxu0 0
    %600 = vmatpush.bf16.msra.mxu0 0
    %601 = vmatpush.bf16.msra.mxu0 0
    %602 = vmatpush.bf16.msra.mxu0 0
    %603 = vmatpush.bf16.msra.mxu0 %v531
    %604 = vmatmul.bf16.gmra.mxu0 %v281
    %v605 = vpop.f32.mrf.mxu0
    %v606 = vadd.f32 %v593, %v605
    %v607 = vpop.f32.mrf.mxu0
    %608 = vdwg.mxu0
    %v609 = vmax.f32 %v606, 0.0
    %v610 = vpack.c.bf16 %v609, %v609
    %v611 = vld [vmem:[#allocation5 + $0x40] sm:$0xf]
    %v612 = vld [vmem:[#allocation5 + $0x44] sm:$0xf]
    %v613 = vld [vmem:[#allocation5 + $0x48] sm:$0xf]
    %v614 = vld [vmem:[#allocation5 + $0x4c] sm:$0xf]
    %v615 = vld [vmem:[#allocation5 + $0x50] sm:$0xf]
    %v616 = vld [vmem:[#allocation5 + $0x54] sm:$0xf]
    %v617 = vld [vmem:[#allocation5 + $0x58] sm:$0xf]
    %v618 = vld [vmem:[#allocation5 + $0x5c] sm:$0xf]
    %v619 = vld [vmem:[#allocation5 + $0x60] sm:$0xf]
    %v620 = vld [vmem:[#allocation5 + $0x64] sm:$0xf]
    %v621 = vld [vmem:[#allocation5 + $0x68] sm:$0xf]
    %v622 = vld [vmem:[#allocation5 + $0x6c] sm:$0xf]
    %v623 = vld [vmem:[#allocation5 + $0x70] sm:$0xf]
    %v624 = vld [vmem:[#allocation5 + $0x74] sm:$0xf]
    %v625 = vld [vmem:[#allocation5 + $0x78] sm:$0xf]
    %v626 = vld [vmem:[#allocation5 + $0x7c] sm:$0xf]
    %v643 = vunpack.c.l.b16 %v611
    %v644 = vunpack.c.l.b16 %v612
    %v645 = vunpack.c.l.b16 %v613
    %v646 = vunpack.c.l.b16 %v614
    %v647 = vunpack.c.l.b16 %v615
    %v648 = vunpack.c.l.b16 %v616
    %v649 = vunpack.c.l.b16 %v617
    %v650 = vunpack.c.l.b16 %v618
    %v651 = vunpack.c.l.b16 %v619
    %v652 = vunpack.c.l.b16 %v620
    %v653 = vunpack.c.l.b16 %v621
    %v654 = vunpack.c.l.b16 %v622
    %v655 = vunpack.c.l.b16 %v623
    %v656 = vunpack.c.l.b16 %v624
    %v657 = vunpack.c.l.b16 %v625
    %v658 = vunpack.c.l.b16 %v626
    %v659 = vpack.c.b16 %v644, %v643
    %v660 = vpack.c.b16 %v646, %v645
    %v661 = vpack.c.b16 %v648, %v647
    %v662 = vpack.c.b16 %v650, %v649
    %v663 = vpack.c.b16 %v652, %v651
    %v664 = vpack.c.b16 %v654, %v653
    %v665 = vpack.c.b16 %v656, %v655
    %v666 = vpack.c.b16 %v658, %v657
    %675 = vmatpush.bf16.msra.mxu0 %v666
    %676 = vmatpush.bf16.msra.mxu0 %v665
    %677 = vmatpush.bf16.msra.mxu0 %v664
    %678 = vmatpush.bf16.msra.mxu0 %v663
    %679 = vmatpush.bf16.msra.mxu0 %v662
    %680 = vmatpush.bf16.msra.mxu0 %v661
    %681 = vmatpush.bf16.msra.mxu0 %v660
    %682 = vmatpush.bf16.msra.mxu0 %v659
    %683 = vmatmul.bf16.gmra.mxu0 %v610
    %v684 = vpop.f32.mrf.mxu0
    %v685 = vadd.f32 0.0, %v684
    %v686 = vpop.f32.mrf.mxu0
    %687 = vdwg.mxu0
    %v704 = vunpack.c.l.b16 %v337
    %v705 = vunpack.c.l.b16 %v338
    %v706 = vunpack.c.l.b16 %v339
    %v707 = vunpack.c.l.b16 %v340
    %v708 = vunpack.c.l.b16 %v341
    %v709 = vunpack.c.l.b16 %v342
    %v710 = vunpack.c.l.b16 %v343
    %v711 = vunpack.c.l.b16 %v344
    %v712 = vunpack.c.l.b16 %v345
    %v713 = vunpack.c.l.b16 %v346
    %v714 = vunpack.c.l.b16 %v347
    %v715 = vunpack.c.l.b16 %v348
    %v716 = vunpack.c.l.b16 %v349
    %v717 = vunpack.c.l.b16 %v350
    %v718 = vunpack.c.l.b16 %v351
    %v719 = vunpack.c.l.b16 %v352
    %v720 = vpack.c.b16 %v705, %v704
    %v721 = vpack.c.b16 %v707, %v706
    %v722 = vpack.c.b16 %v709, %v708
    %v723 = vpack.c.b16 %v711, %v710
    %v724 = vpack.c.b16 %v713, %v712
    %v725 = vpack.c.b16 %v715, %v714
    %v726 = vpack.c.b16 %v717, %v716
    %v727 = vpack.c.b16 %v719, %v718
    %736 = vmatpush.bf16.msra.mxu0 %v727
    %737 = vmatpush.bf16.msra.mxu0 %v726
    %738 = vmatpush.bf16.msra.mxu0 %v725
    %739 = vmatpush.bf16.msra.mxu0 %v724
    %740 = vmatpush.bf16.msra.mxu0 %v723
    %741 = vmatpush.bf16.msra.mxu0 %v722
    %742 = vmatpush.bf16.msra.mxu0 %v721
    %743 = vmatpush.bf16.msra.mxu0 %v720
    %744 = vmatmul.bf16.gmra.mxu0 %v336
    %v745 = vpop.f32.mrf.mxu0
    %v746 = vadd.f32 %v685, %v745
    %v747 = vpop.f32.mrf.mxu0
    %748 = vdwg.mxu0
    %v749 = vld [vmem:[#allocation2 + $0x8] sm:$0xf]
    %v750 = vld [vmem:[#allocation2 + $0x28] sm:$0xf]
    %v751 = vld [vmem:[#allocation2 + $0x48] sm:$0xf]
    %v752 = vld [vmem:[#allocation2 + $0x68] sm:$0xf]
    %v753 = vld [vmem:[#allocation2 + $0x88] sm:$0xf]
    %v754 = vld [vmem:[#allocation2 + $0xa8] sm:$0xf]
    %v755 = vld [vmem:[#allocation2 + $0xc8] sm:$0xf]
    %v756 = vld [vmem:[#allocation2 + $0xe8] sm:$0xf]
    %v757 = vld [vmem:[#allocation2 + $0x108] sm:$0xf]
    %v758 = vld [vmem:[#allocation2 + $0x128] sm:$0xf]
    %v759 = vld [vmem:[#allocation2 + $0x148] sm:$0xf]
    %v760 = vld [vmem:[#allocation2 + $0x168] sm:$0xf]
    %v761 = vld [vmem:[#allocation2 + $0x188] sm:$0xf]
    %v762 = vld [vmem:[#allocation2 + $0x1a8] sm:$0xf]
    %v763 = vld [vmem:[#allocation2 + $0x1c8] sm:$0xf]
    %v764 = vld [vmem:[#allocation2 + $0x1e8] sm:$0xf]
    %v765 = vld [vmem:[#allocation2 + $0x208] sm:$0xf]
    %v766 = vld [vmem:[#allocation2 + $0x228] sm:$0xf]
    %v767 = vld [vmem:[#allocation2 + $0x248] sm:$0xf]
    %v768 = vld [vmem:[#allocation2 + $0x268] sm:$0xf]
    %v769 = vld [vmem:[#allocation2 + $0x288] sm:$0xf]
    %v770 = vld [vmem:[#allocation2 + $0x2a8] sm:$0xf]
    %v771 = vld [vmem:[#allocation2 + $0x2c8] sm:$0xf]
    %v772 = vld [vmem:[#allocation2 + $0x2e8] sm:$0xf]
    %v773 = vld [vmem:[#allocation2 + $0x308] sm:$0xf]
    %v774 = vld [vmem:[#allocation2 + $0x328] sm:$0xf]
    %v775 = vld [vmem:[#allocation2 + $0x348] sm:$0xf]
    %v776 = vld [vmem:[#allocation2 + $0x368] sm:$0xf]
    %v777 = vld [vmem:[#allocation2 + $0x388] sm:$0xf]
    %v778 = vld [vmem:[#allocation2 + $0x3a8] sm:$0xf]
    %v779 = vld [vmem:[#allocation2 + $0x3c8] sm:$0xf]
    %v780 = vld [vmem:[#allocation2 + $0x3e8] sm:$0xf]
    %v781 = vld [vmem:[#allocation2 + $0x408] sm:$0xf]
    %v782 = vld [vmem:[#allocation2 + $0x428] sm:$0xf]
    %v783 = vld [vmem:[#allocation2 + $0x448] sm:$0xf]
    %v784 = vld [vmem:[#allocation2 + $0x468] sm:$0xf]
    %v785 = vld [vmem:[#allocation2 + $0x488] sm:$0xf]
    %v786 = vld [vmem:[#allocation2 + $0x4a8] sm:$0xf]
    %v787 = vld [vmem:[#allocation2 + $0x4c8] sm:$0xf]
    %v788 = vld [vmem:[#allocation2 + $0x4e8] sm:$0xf]
    %v789 = vld [vmem:[#allocation2 + $0x508] sm:$0xf]
    %v790 = vld [vmem:[#allocation2 + $0x528] sm:$0xf]
    %v791 = vld [vmem:[#allocation2 + $0x548] sm:$0xf]
    %v792 = vld [vmem:[#allocation2 + $0x568] sm:$0xf]
    %v793 = vld [vmem:[#allocation2 + $0x588] sm:$0xf]
    %v794 = vld [vmem:[#allocation2 + $0x5a8] sm:$0xf]
    %v795 = vld [vmem:[#allocation2 + $0x5c8] sm:$0xf]
    %v796 = vld [vmem:[#allocation2 + $0x5e8] sm:$0xf]
    %v797 = vld [vmem:[#allocation2 + $0x608] sm:$0xf]
    %v798 = vld [vmem:[#allocation2 + $0x628] sm:$0xf]
    %v799 = vld [vmem:[%s2 + $0x2] sm:$0x1]
    %v801 = vperm.slane %v799, 0
    %v853 = vunpack.c.l.b16 %v749
    %v854 = vunpack.c.l.b16 %v750
    %v855 = vunpack.c.l.b16 %v751
    %v856 = vunpack.c.l.b16 %v752
    %v857 = vunpack.c.l.b16 %v753
    %v858 = vunpack.c.l.b16 %v754
    %v859 = vunpack.c.l.b16 %v755
    %v860 = vunpack.c.l.b16 %v756
    %v861 = vunpack.c.l.b16 %v757
    %v862 = vunpack.c.l.b16 %v758
    %v863 = vunpack.c.l.b16 %v759
    %v864 = vunpack.c.l.b16 %v760
    %v865 = vunpack.c.l.b16 %v761
    %v866 = vunpack.c.l.b16 %v762
    %v867 = vunpack.c.l.b16 %v763
    %v868 = vunpack.c.l.b16 %v764
    %v869 = vunpack.c.l.b16 %v765
    %v870 = vunpack.c.l.b16 %v766
    %v871 = vunpack.c.l.b16 %v767
    %v872 = vunpack.c.l.b16 %v768
    %v873 = vunpack.c.l.b16 %v769
    %v874 = vunpack.c.l.b16 %v770
    %v875 = vunpack.c.l.b16 %v771
    %v876 = vunpack.c.l.b16 %v772
    %v877 = vunpack.c.l.b16 %v773
    %v878 = vunpack.c.l.b16 %v774
    %v879 = vunpack.c.l.b16 %v775
    %v880 = vunpack.c.l.b16 %v776
    %v881 = vunpack.c.l.b16 %v777
    %v882 = vunpack.c.l.b16 %v778
    %v883 = vunpack.c.l.b16 %v779
    %v884 = vunpack.c.l.b16 %v780
    %v885 = vunpack.c.l.b16 %v781
    %v886 = vunpack.c.l.b16 %v782
    %v887 = vunpack.c.l.b16 %v783
    %v888 = vunpack.c.l.b16 %v784
    %v889 = vunpack.c.l.b16 %v785
    %v890 = vunpack.c.l.b16 %v786
    %v891 = vunpack.c.l.b16 %v787
    %v892 = vunpack.c.l.b16 %v788
    %v893 = vunpack.c.l.b16 %v789
    %v894 = vunpack.c.l.b16 %v790
    %v895 = vunpack.c.l.b16 %v791
    %v896 = vunpack.c.l.b16 %v792
    %v897 = vunpack.c.l.b16 %v793
    %v898 = vunpack.c.l.b16 %v794
    %v899 = vunpack.c.l.b16 %v795
    %v900 = vunpack.c.l.b16 %v796
    %v901 = vunpack.c.l.b16 %v797
    %v902 = vunpack.c.l.b16 %v798
    %v903 = vpack.c.b16 %v854, %v853
    %v904 = vpack.c.b16 %v856, %v855
    %v905 = vpack.c.b16 %v858, %v857
    %v906 = vpack.c.b16 %v860, %v859
    %v907 = vpack.c.b16 %v862, %v861
    %v908 = vpack.c.b16 %v864, %v863
    %v909 = vpack.c.b16 %v866, %v865
    %v910 = vpack.c.b16 %v868, %v867
    %v911 = vpack.c.b16 %v870, %v869
    %v912 = vpack.c.b16 %v872, %v871
    %v913 = vpack.c.b16 %v874, %v873
    %v914 = vpack.c.b16 %v876, %v875
    %v915 = vpack.c.b16 %v878, %v877
    %v916 = vpack.c.b16 %v880, %v879
    %v917 = vpack.c.b16 %v882, %v881
    %v918 = vpack.c.b16 %v884, %v883
    %v919 = vpack.c.b16 %v886, %v885
    %v920 = vpack.c.b16 %v888, %v887
    %v921 = vpack.c.b16 %v890, %v889
    %v922 = vpack.c.b16 %v892, %v891
    %v923 = vpack.c.b16 %v894, %v893
    %v924 = vpack.c.b16 %v896, %v895
    %v925 = vpack.c.b16 %v898, %v897
    %v926 = vpack.c.b16 %v900, %v899
    %v927 = vpack.c.b16 %v902, %v901
    %953 = vmatpush.bf16.msra.mxu0 %v910
    %954 = vmatpush.bf16.msra.mxu0 %v909
    %955 = vmatpush.bf16.msra.mxu0 %v908
    %956 = vmatpush.bf16.msra.mxu0 %v907
    %957 = vmatpush.bf16.msra.mxu0 %v906
    %958 = vmatpush.bf16.msra.mxu0 %v905
    %959 = vmatpush.bf16.msra.mxu0 %v904
    %960 = vmatpush.bf16.msra.mxu0 %v903
    %961 = vmatmul.bf16.gmra.mxu0 %v71
    %v962 = vpop.f32.mrf.mxu0
    %v963 = vadd.f32 %v801, %v962
    %v964 = vpop.f32.mrf.mxu0
    %965 = vdwg.mxu0
    %966 = vmatpush.bf16.msra.mxu0 %v918
    %967 = vmatpush.bf16.msra.mxu0 %v917
    %968 = vmatpush.bf16.msra.mxu0 %v916
    %969 = vmatpush.bf16.msra.mxu0 %v915
    %970 = vmatpush.bf16.msra.mxu0 %v914
    %971 = vmatpush.bf16.msra.mxu0 %v913
    %972 = vmatpush.bf16.msra.mxu0 %v912
    %973 = vmatpush.bf16.msra.mxu0 %v911
    %974 = vmatmul.bf16.gmra.mxu0 %v72
    %v975 = vpop.f32.mrf.mxu0
    %v976 = vadd.f32 %v963, %v975
    %v977 = vpop.f32.mrf.mxu0
    %978 = vdwg.mxu0
    %979 = vmatpush.bf16.msra.mxu0 %v926
    %980 = vmatpush.bf16.msra.mxu0 %v925
    %981 = vmatpush.bf16.msra.mxu0 %v924
    %982 = vmatpush.bf16.msra.mxu0 %v923
    %983 = vmatpush.bf16.msra.mxu0 %v922
    %984 = vmatpush.bf16.msra.mxu0 %v921
    %985 = vmatpush.bf16.msra.mxu0 %v920
    %986 = vmatpush.bf16.msra.mxu0 %v919
    %987 = vmatmul.bf16.gmra.mxu0 %v73
    %v988 = vpop.f32.mrf.mxu0
    %v989 = vadd.f32 %v976, %v988
    %v990 = vpop.f32.mrf.mxu0
    %991 = vdwg.mxu0
    %992 = vmatpush.bf16.msra.mxu0 0
    %993 = vmatpush.bf16.msra.mxu0 0
    %994 = vmatpush.bf16.msra.mxu0 0
    %995 = vmatpush.bf16.msra.mxu0 0
    %996 = vmatpush.bf16.msra.mxu0 0
    %997 = vmatpush.bf16.msra.mxu0 0
    %998 = vmatpush.bf16.msra.mxu0 0
    %999 = vmatpush.bf16.msra.mxu0 %v927
    %1000 = vmatmul.bf16.gmra.mxu0 %v281
    %v1001 = vpop.f32.mrf.mxu0
    %v1002 = vadd.f32 %v989, %v1001
    %v1003 = vpop.f32.mrf.mxu0
    %1004 = vdwg.mxu0
    %v1005 = vmax.f32 %v1002, 0.0
    %v1006 = vpack.c.bf16 %v1005, %v1005
    %v1007 = vld [vmem:[#allocation5 + $0x80] sm:$0xf]
    %v1008 = vld [vmem:[#allocation5 + $0x84] sm:$0xf]
    %v1009 = vld [vmem:[#allocation5 + $0x88] sm:$0xf]
    %v1010 = vld [vmem:[#allocation5 + $0x8c] sm:$0xf]
    %v1011 = vld [vmem:[#allocation5 + $0x90] sm:$0xf]
    %v1012 = vld [vmem:[#allocation5 + $0x94] sm:$0xf]
    %v1013 = vld [vmem:[#allocation5 + $0x98] sm:$0xf]
    %v1014 = vld [vmem:[#allocation5 + $0x9c] sm:$0xf]
    %v1015 = vld [vmem:[#allocation5 + $0xa0] sm:$0xf]
    %v1016 = vld [vmem:[#allocation5 + $0xa4] sm:$0xf]
    %v1017 = vld [vmem:[#allocation5 + $0xa8] sm:$0xf]
    %v1018 = vld [vmem:[#allocation5 + $0xac] sm:$0xf]
    %v1019 = vld [vmem:[#allocation5 + $0xb0] sm:$0xf]
    %v1020 = vld [vmem:[#allocation5 + $0xb4] sm:$0xf]
    %v1021 = vld [vmem:[#allocation5 + $0xb8] sm:$0xf]
    %v1022 = vld [vmem:[#allocation5 + $0xbc] sm:$0xf]
    %v1039 = vunpack.c.l.b16 %v1007
    %v1040 = vunpack.c.l.b16 %v1008
    %v1041 = vunpack.c.l.b16 %v1009
    %v1042 = vunpack.c.l.b16 %v1010
    %v1043 = vunpack.c.l.b16 %v1011
    %v1044 = vunpack.c.l.b16 %v1012
    %v1045 = vunpack.c.l.b16 %v1013
    %v1046 = vunpack.c.l.b16 %v1014
    %v1047 = vunpack.c.l.b16 %v1015
    %v1048 = vunpack.c.l.b16 %v1016
    %v1049 = vunpack.c.l.b16 %v1017
    %v1050 = vunpack.c.l.b16 %v1018
    %v1051 = vunpack.c.l.b16 %v1019
    %v1052 = vunpack.c.l.b16 %v1020
    %v1053 = vunpack.c.l.b16 %v1021
    %v1054 = vunpack.c.l.b16 %v1022
    %v1055 = vpack.c.b16 %v1040, %v1039
    %v1056 = vpack.c.b16 %v1042, %v1041
    %v1057 = vpack.c.b16 %v1044, %v1043
    %v1058 = vpack.c.b16 %v1046, %v1045
    %v1059 = vpack.c.b16 %v1048, %v1047
    %v1060 = vpack.c.b16 %v1050, %v1049
    %v1061 = vpack.c.b16 %v1052, %v1051
    %v1062 = vpack.c.b16 %v1054, %v1053
    %1071 = vmatpush.bf16.msra.mxu0 %v1062
    %1072 = vmatpush.bf16.msra.mxu0 %v1061
    %1073 = vmatpush.bf16.msra.mxu0 %v1060
    %1074 = vmatpush.bf16.msra.mxu0 %v1059
    %1075 = vmatpush.bf16.msra.mxu0 %v1058
    %1076 = vmatpush.bf16.msra.mxu0 %v1057
    %1077 = vmatpush.bf16.msra.mxu0 %v1056
    %1078 = vmatpush.bf16.msra.mxu0 %v1055
    %1079 = vmatmul.bf16.gmra.mxu0 %v1006
    %v1080 = vpop.f32.mrf.mxu0
    %v1081 = vadd.f32 0.0, %v1080
    %v1082 = vpop.f32.mrf.mxu0
    %1083 = vdwg.mxu0
    %v1084 = vadd.f32 %v746, %v1081
    %v1085 = vld [vmem:[#allocation2 + $0xc] sm:$0xf]
    %v1086 = vld [vmem:[#allocation2 + $0x2c] sm:$0xf]
    %v1087 = vld [vmem:[#allocation2 + $0x4c] sm:$0xf]
    %v1088 = vld [vmem:[#allocation2 + $0x6c] sm:$0xf]
    %v1089 = vld [vmem:[#allocation2 + $0x8c] sm:$0xf]
    %v1090 = vld [vmem:[#allocation2 + $0xac] sm:$0xf]
    %v1091 = vld [vmem:[#allocation2 + $0xcc] sm:$0xf]
    %v1092 = vld [vmem:[#allocation2 + $0xec] sm:$0xf]
    %v1093 = vld [vmem:[#allocation2 + $0x10c] sm:$0xf]
    %v1094 = vld [vmem:[#allocation2 + $0x12c] sm:$0xf]
    %v1095 = vld [vmem:[#allocation2 + $0x14c] sm:$0xf]
    %v1096 = vld [vmem:[#allocation2 + $0x16c] sm:$0xf]
    %v1097 = vld [vmem:[#allocation2 + $0x18c] sm:$0xf]
    %v1098 = vld [vmem:[#allocation2 + $0x1ac] sm:$0xf]
    %v1099 = vld [vmem:[#allocation2 + $0x1cc] sm:$0xf]
    %v1100 = vld [vmem:[#allocation2 + $0x1ec] sm:$0xf]
    %v1101 = vld [vmem:[#allocation2 + $0x20c] sm:$0xf]
    %v1102 = vld [vmem:[#allocation2 + $0x22c] sm:$0xf]
    %v1103 = vld [vmem:[#allocation2 + $0x24c] sm:$0xf]
    %v1104 = vld [vmem:[#allocation2 + $0x26c] sm:$0xf]
    %v1105 = vld [vmem:[#allocation2 + $0x28c] sm:$0xf]
    %v1106 = vld [vmem:[#allocation2 + $0x2ac] sm:$0xf]
    %v1107 = vld [vmem:[#allocation2 + $0x2cc] sm:$0xf]
    %v1108 = vld [vmem:[#allocation2 + $0x2ec] sm:$0xf]
    %v1109 = vld [vmem:[#allocation2 + $0x30c] sm:$0xf]
    %v1110 = vld [vmem:[#allocation2 + $0x32c] sm:$0xf]
    %v1111 = vld [vmem:[#allocation2 + $0x34c] sm:$0xf]
    %v1112 = vld [vmem:[#allocation2 + $0x36c] sm:$0xf]
    %v1113 = vld [vmem:[#allocation2 + $0x38c] sm:$0xf]
    %v1114 = vld [vmem:[#allocation2 + $0x3ac] sm:$0xf]
    %v1115 = vld [vmem:[#allocation2 + $0x3cc] sm:$0xf]
    %v1116 = vld [vmem:[#allocation2 + $0x3ec] sm:$0xf]
    %v1117 = vld [vmem:[#allocation2 + $0x40c] sm:$0xf]
    %v1118 = vld [vmem:[#allocation2 + $0x42c] sm:$0xf]
    %v1119 = vld [vmem:[#allocation2 + $0x44c] sm:$0xf]
    %v1120 = vld [vmem:[#allocation2 + $0x46c] sm:$0xf]
    %v1121 = vld [vmem:[#allocation2 + $0x48c] sm:$0xf]
    %v1122 = vld [vmem:[#allocation2 + $0x4ac] sm:$0xf]
    %v1123 = vld [vmem:[#allocation2 + $0x4cc] sm:$0xf]
    %v1124 = vld [vmem:[#allocation2 + $0x4ec] sm:$0xf]
    %v1125 = vld [vmem:[#allocation2 + $0x50c] sm:$0xf]
    %v1126 = vld [vmem:[#allocation2 + $0x52c] sm:$0xf]
    %v1127 = vld [vmem:[#allocation2 + $0x54c] sm:$0xf]
    %v1128 = vld [vmem:[#allocation2 + $0x56c] sm:$0xf]
    %v1129 = vld [vmem:[#allocation2 + $0x58c] sm:$0xf]
    %v1130 = vld [vmem:[#allocation2 + $0x5ac] sm:$0xf]
    %v1131 = vld [vmem:[#allocation2 + $0x5cc] sm:$0xf]
    %v1132 = vld [vmem:[#allocation2 + $0x5ec] sm:$0xf]
    %v1133 = vld [vmem:[#allocation2 + $0x60c] sm:$0xf]
    %v1134 = vld [vmem:[#allocation2 + $0x62c] sm:$0xf]
    %v1135 = vld [vmem:[%s2 + $0x3] sm:$0x1]
    %v1137 = vperm.slane %v1135, 0
    %v1189 = vunpack.c.l.b16 %v1085
    %v1190 = vunpack.c.l.b16 %v1086
    %v1191 = vunpack.c.l.b16 %v1087
    %v1192 = vunpack.c.l.b16 %v1088
    %v1193 = vunpack.c.l.b16 %v1089
    %v1194 = vunpack.c.l.b16 %v1090
    %v1195 = vunpack.c.l.b16 %v1091
    %v1196 = vunpack.c.l.b16 %v1092
    %v1197 = vunpack.c.l.b16 %v1093
    %v1198 = vunpack.c.l.b16 %v1094
    %v1199 = vunpack.c.l.b16 %v1095
    %v1200 = vunpack.c.l.b16 %v1096
    %v1201 = vunpack.c.l.b16 %v1097
    %v1202 = vunpack.c.l.b16 %v1098
    %v1203 = vunpack.c.l.b16 %v1099
    %v1204 = vunpack.c.l.b16 %v1100
    %v1205 = vunpack.c.l.b16 %v1101
    %v1206 = vunpack.c.l.b16 %v1102
    %v1207 = vunpack.c.l.b16 %v1103
    %v1208 = vunpack.c.l.b16 %v1104
    %v1209 = vunpack.c.l.b16 %v1105
    %v1210 = vunpack.c.l.b16 %v1106
    %v1211 = vunpack.c.l.b16 %v1107
    %v1212 = vunpack.c.l.b16 %v1108
    %v1213 = vunpack.c.l.b16 %v1109
    %v1214 = vunpack.c.l.b16 %v1110
    %v1215 = vunpack.c.l.b16 %v1111
    %v1216 = vunpack.c.l.b16 %v1112
    %v1217 = vunpack.c.l.b16 %v1113
    %v1218 = vunpack.c.l.b16 %v1114
    %v1219 = vunpack.c.l.b16 %v1115
    %v1220 = vunpack.c.l.b16 %v1116
    %v1221 = vunpack.c.l.b16 %v1117
    %v1222 = vunpack.c.l.b16 %v1118
    %v1223 = vunpack.c.l.b16 %v1119
    %v1224 = vunpack.c.l.b16 %v1120
    %v1225 = vunpack.c.l.b16 %v1121
    %v1226 = vunpack.c.l.b16 %v1122
    %v1227 = vunpack.c.l.b16 %v1123
    %v1228 = vunpack.c.l.b16 %v1124
    %v1229 = vunpack.c.l.b16 %v1125
    %v1230 = vunpack.c.l.b16 %v1126
    %v1231 = vunpack.c.l.b16 %v1127
    %v1232 = vunpack.c.l.b16 %v1128
    %v1233 = vunpack.c.l.b16 %v1129
    %v1234 = vunpack.c.l.b16 %v1130
    %v1235 = vunpack.c.l.b16 %v1131
    %v1236 = vunpack.c.l.b16 %v1132
    %v1237 = vunpack.c.l.b16 %v1133
    %v1238 = vunpack.c.l.b16 %v1134
    %v1239 = vpack.c.b16 %v1190, %v1189
    %v1240 = vpack.c.b16 %v1192, %v1191
    %v1241 = vpack.c.b16 %v1194, %v1193
    %v1242 = vpack.c.b16 %v1196, %v1195
    %v1243 = vpack.c.b16 %v1198, %v1197
    %v1244 = vpack.c.b16 %v1200, %v1199
    %v1245 = vpack.c.b16 %v1202, %v1201
    %v1246 = vpack.c.b16 %v1204, %v1203
    %v1247 = vpack.c.b16 %v1206, %v1205
    %v1248 = vpack.c.b16 %v1208, %v1207
    %v1249 = vpack.c.b16 %v1210, %v1209
    %v1250 = vpack.c.b16 %v1212, %v1211
    %v1251 = vpack.c.b16 %v1214, %v1213
    %v1252 = vpack.c.b16 %v1216, %v1215
    %v1253 = vpack.c.b16 %v1218, %v1217
    %v1254 = vpack.c.b16 %v1220, %v1219
    %v1255 = vpack.c.b16 %v1222, %v1221
    %v1256 = vpack.c.b16 %v1224, %v1223
    %v1257 = vpack.c.b16 %v1226, %v1225
    %v1258 = vpack.c.b16 %v1228, %v1227
    %v1259 = vpack.c.b16 %v1230, %v1229
    %v1260 = vpack.c.b16 %v1232, %v1231
    %v1261 = vpack.c.b16 %v1234, %v1233
    %v1262 = vpack.c.b16 %v1236, %v1235
    %v1263 = vpack.c.b16 %v1238, %v1237
    %1289 = vmatpush.bf16.msra.mxu0 %v1246
    %1290 = vmatpush.bf16.msra.mxu0 %v1245
    %1291 = vmatpush.bf16.msra.mxu0 %v1244
    %1292 = vmatpush.bf16.msra.mxu0 %v1243
    %1293 = vmatpush.bf16.msra.mxu0 %v1242
    %1294 = vmatpush.bf16.msra.mxu0 %v1241
    %1295 = vmatpush.bf16.msra.mxu0 %v1240
    %1296 = vmatpush.bf16.msra.mxu0 %v1239
    %1297 = vmatmul.bf16.gmra.mxu0 %v71
    %v1298 = vpop.f32.mrf.mxu0
    %v1299 = vadd.f32 %v1137, %v1298
    %v1300 = vpop.f32.mrf.mxu0
    %1301 = vdwg.mxu0
    %1302 = vmatpush.bf16.msra.mxu0 %v1254
    %1303 = vmatpush.bf16.msra.mxu0 %v1253
    %1304 = vmatpush.bf16.msra.mxu0 %v1252
    %1305 = vmatpush.bf16.msra.mxu0 %v1251
    %1306 = vmatpush.bf16.msra.mxu0 %v1250
    %1307 = vmatpush.bf16.msra.mxu0 %v1249
    %1308 = vmatpush.bf16.msra.mxu0 %v1248
    %1309 = vmatpush.bf16.msra.mxu0 %v1247
    %1310 = vmatmul.bf16.gmra.mxu0 %v72
    %v1311 = vpop.f32.mrf.mxu0
    %v1312 = vadd.f32 %v1299, %v1311
    %v1313 = vpop.f32.mrf.mxu0
    %1314 = vdwg.mxu0
    %1315 = vmatpush.bf16.msra.mxu0 %v1262
    %1316 = vmatpush.bf16.msra.mxu0 %v1261
    %1317 = vmatpush.bf16.msra.mxu0 %v1260
    %1318 = vmatpush.bf16.msra.mxu0 %v1259
    %1319 = vmatpush.bf16.msra.mxu0 %v1258
    %1320 = vmatpush.bf16.msra.mxu0 %v1257
    %1321 = vmatpush.bf16.msra.mxu0 %v1256
    %1322 = vmatpush.bf16.msra.mxu0 %v1255
    %1323 = vmatmul.bf16.gmra.mxu0 %v73
    %v1324 = vpop.f32.mrf.mxu0
    %v1325 = vadd.f32 %v1312, %v1324
    %v1326 = vpop.f32.mrf.mxu0
    %1327 = vdwg.mxu0
    %1328 = vmatpush.bf16.msra.mxu0 0
    %1329 = vmatpush.bf16.msra.mxu0 0
    %1330 = vmatpush.bf16.msra.mxu0 0
    %1331 = vmatpush.bf16.msra.mxu0 0
    %1332 = vmatpush.bf16.msra.mxu0 0
    %1333 = vmatpush.bf16.msra.mxu0 0
    %1334 = vmatpush.bf16.msra.mxu0 0
    %1335 = vmatpush.bf16.msra.mxu0 %v1263
    %1336 = vmatmul.bf16.gmra.mxu0 %v281
    %v1337 = vpop.f32.mrf.mxu0
    %v1338 = vadd.f32 %v1325, %v1337
    %v1339 = vpop.f32.mrf.mxu0
    %1340 = vdwg.mxu0
    %v1341 = vmax.f32 %v1338, 0.0
    %v1342 = vpack.c.bf16 %v1341, %v1341
    %v1343 = vld [vmem:[#allocation5 + $0xc0] sm:$0xf]
    %v1344 = vld [vmem:[#allocation5 + $0xc4] sm:$0xf]
    %v1345 = vld [vmem:[#allocation5 + $0xc8] sm:$0xf]
    %v1346 = vld [vmem:[#allocation5 + $0xcc] sm:$0xf]
    %v1347 = vld [vmem:[#allocation5 + $0xd0] sm:$0xf]
    %v1348 = vld [vmem:[#allocation5 + $0xd4] sm:$0xf]
    %v1349 = vld [vmem:[#allocation5 + $0xd8] sm:$0xf]
    %v1350 = vld [vmem:[#allocation5 + $0xdc] sm:$0xf]
    %v1351 = vld [vmem:[#allocation5 + $0xe0] sm:$0xf]
    %v1352 = vld [vmem:[#allocation5 + $0xe4] sm:$0xf]
    %v1353 = vld [vmem:[#allocation5 + $0xe8] sm:$0xf]
    %v1354 = vld [vmem:[#allocation5 + $0xec] sm:$0xf]
    %v1355 = vld [vmem:[#allocation5 + $0xf0] sm:$0xf]
    %v1356 = vld [vmem:[#allocation5 + $0xf4] sm:$0xf]
    %v1357 = vld [vmem:[#allocation5 + $0xf8] sm:$0xf]
    %v1358 = vld [vmem:[#allocation5 + $0xfc] sm:$0xf]
    %v1375 = vunpack.c.l.b16 %v1343
    %v1376 = vunpack.c.l.b16 %v1344
    %v1377 = vunpack.c.l.b16 %v1345
    %v1378 = vunpack.c.l.b16 %v1346
    %v1379 = vunpack.c.l.b16 %v1347
    %v1380 = vunpack.c.l.b16 %v1348
    %v1381 = vunpack.c.l.b16 %v1349
    %v1382 = vunpack.c.l.b16 %v1350
    %v1383 = vunpack.c.l.b16 %v1351
    %v1384 = vunpack.c.l.b16 %v1352
    %v1385 = vunpack.c.l.b16 %v1353
    %v1386 = vunpack.c.l.b16 %v1354
    %v1387 = vunpack.c.l.b16 %v1355
    %v1388 = vunpack.c.l.b16 %v1356
    %v1389 = vunpack.c.l.b16 %v1357
    %v1390 = vunpack.c.l.b16 %v1358
    %v1391 = vpack.c.b16 %v1376, %v1375
    %v1392 = vpack.c.b16 %v1378, %v1377
    %v1393 = vpack.c.b16 %v1380, %v1379
    %v1394 = vpack.c.b16 %v1382, %v1381
    %v1395 = vpack.c.b16 %v1384, %v1383
    %v1396 = vpack.c.b16 %v1386, %v1385
    %v1397 = vpack.c.b16 %v1388, %v1387
    %v1398 = vpack.c.b16 %v1390, %v1389
    %1407 = vmatpush.bf16.msra.mxu0 %v1398
    %1408 = vmatpush.bf16.msra.mxu0 %v1397
    %1409 = vmatpush.bf16.msra.mxu0 %v1396
    %1410 = vmatpush.bf16.msra.mxu0 %v1395
    %1411 = vmatpush.bf16.msra.mxu0 %v1394
    %1412 = vmatpush.bf16.msra.mxu0 %v1393
    %1413 = vmatpush.bf16.msra.mxu0 %v1392
    %1414 = vmatpush.bf16.msra.mxu0 %v1391
    %1415 = vmatmul.bf16.gmra.mxu0 %v1342
    %v1416 = vpop.f32.mrf.mxu0
    %v1417 = vadd.f32 0.0, %v1416
    %v1418 = vpop.f32.mrf.mxu0
    %1419 = vdwg.mxu0
    %v1420 = vadd.f32 %v1084, %v1417
    %v1421 = vld [vmem:[#allocation2 + $0x10] sm:$0xf]
    %v1422 = vld [vmem:[#allocation2 + $0x30] sm:$0xf]
    %v1423 = vld [vmem:[#allocation2 + $0x50] sm:$0xf]
    %v1424 = vld [vmem:[#allocation2 + $0x70] sm:$0xf]
    %v1425 = vld [vmem:[#allocation2 + $0x90] sm:$0xf]
    %v1426 = vld [vmem:[#allocation2 + $0xb0] sm:$0xf]
    %v1427 = vld [vmem:[#allocation2 + $0xd0] sm:$0xf]
    %v1428 = vld [vmem:[#allocation2 + $0xf0] sm:$0xf]
    %v1429 = vld [vmem:[#allocation2 + $0x110] sm:$0xf]
    %v1430 = vld [vmem:[#allocation2 + $0x130] sm:$0xf]
    %v1431 = vld [vmem:[#allocation2 + $0x150] sm:$0xf]
    %v1432 = vld [vmem:[#allocation2 + $0x170] sm:$0xf]
    %v1433 = vld [vmem:[#allocation2 + $0x190] sm:$0xf]
    %v1434 = vld [vmem:[#allocation2 + $0x1b0] sm:$0xf]
    %v1435 = vld [vmem:[#allocation2 + $0x1d0] sm:$0xf]
    %v1436 = vld [vmem:[#allocation2 + $0x1f0] sm:$0xf]
    %v1437 = vld [vmem:[#allocation2 + $0x210] sm:$0xf]
    %v1438 = vld [vmem:[#allocation2 + $0x230] sm:$0xf]
    %v1439 = vld [vmem:[#allocation2 + $0x250] sm:$0xf]
    %v1440 = vld [vmem:[#allocation2 + $0x270] sm:$0xf]
    %v1441 = vld [vmem:[#allocation2 + $0x290] sm:$0xf]
    %v1442 = vld [vmem:[#allocation2 + $0x2b0] sm:$0xf]
    %v1443 = vld [vmem:[#allocation2 + $0x2d0] sm:$0xf]
    %v1444 = vld [vmem:[#allocation2 + $0x2f0] sm:$0xf]
    %v1445 = vld [vmem:[#allocation2 + $0x310] sm:$0xf]
    %v1446 = vld [vmem:[#allocation2 + $0x330] sm:$0xf]
    %v1447 = vld [vmem:[#allocation2 + $0x350] sm:$0xf]
    %v1448 = vld [vmem:[#allocation2 + $0x370] sm:$0xf]
    %v1449 = vld [vmem:[#allocation2 + $0x390] sm:$0xf]
    %v1450 = vld [vmem:[#allocation2 + $0x3b0] sm:$0xf]
    %v1451 = vld [vmem:[#allocation2 + $0x3d0] sm:$0xf]
    %v1452 = vld [vmem:[#allocation2 + $0x3f0] sm:$0xf]
    %v1453 = vld [vmem:[#allocation2 + $0x410] sm:$0xf]
    %v1454 = vld [vmem:[#allocation2 + $0x430] sm:$0xf]
    %v1455 = vld [vmem:[#allocation2 + $0x450] sm:$0xf]
    %v1456 = vld [vmem:[#allocation2 + $0x470] sm:$0xf]
    %v1457 = vld [vmem:[#allocation2 + $0x490] sm:$0xf]
    %v1458 = vld [vmem:[#allocation2 + $0x4b0] sm:$0xf]
    %v1459 = vld [vmem:[#allocation2 + $0x4d0] sm:$0xf]
    %v1460 = vld [vmem:[#allocation2 + $0x4f0] sm:$0xf]
    %v1461 = vld [vmem:[#allocation2 + $0x510] sm:$0xf]
    %v1462 = vld [vmem:[#allocation2 + $0x530] sm:$0xf]
    %v1463 = vld [vmem:[#allocation2 + $0x550] sm:$0xf]
    %v1464 = vld [vmem:[#allocation2 + $0x570] sm:$0xf]
    %v1465 = vld [vmem:[#allocation2 + $0x590] sm:$0xf]
    %v1466 = vld [vmem:[#allocation2 + $0x5b0] sm:$0xf]
    %v1467 = vld [vmem:[#allocation2 + $0x5d0] sm:$0xf]
    %v1468 = vld [vmem:[#allocation2 + $0x5f0] sm:$0xf]
    %v1469 = vld [vmem:[#allocation2 + $0x610] sm:$0xf]
    %v1470 = vld [vmem:[#allocation2 + $0x630] sm:$0xf]
    %v1471 = vld [vmem:[%s2 + $0x4] sm:$0x1]
    %v1473 = vperm.slane %v1471, 0
    %v1525 = vunpack.c.l.b16 %v1421
    %v1526 = vunpack.c.l.b16 %v1422
    %v1527 = vunpack.c.l.b16 %v1423
    %v1528 = vunpack.c.l.b16 %v1424
    %v1529 = vunpack.c.l.b16 %v1425
    %v1530 = vunpack.c.l.b16 %v1426
    %v1531 = vunpack.c.l.b16 %v1427
    %v1532 = vunpack.c.l.b16 %v1428
    %v1533 = vunpack.c.l.b16 %v1429
    %v1534 = vunpack.c.l.b16 %v1430
    %v1535 = vunpack.c.l.b16 %v1431
    %v1536 = vunpack.c.l.b16 %v1432
    %v1537 = vunpack.c.l.b16 %v1433
    %v1538 = vunpack.c.l.b16 %v1434
    %v1539 = vunpack.c.l.b16 %v1435
    %v1540 = vunpack.c.l.b16 %v1436
    %v1541 = vunpack.c.l.b16 %v1437
    %v1542 = vunpack.c.l.b16 %v1438
    %v1543 = vunpack.c.l.b16 %v1439
    %v1544 = vunpack.c.l.b16 %v1440
    %v1545 = vunpack.c.l.b16 %v1441
    %v1546 = vunpack.c.l.b16 %v1442
    %v1547 = vunpack.c.l.b16 %v1443
    %v1548 = vunpack.c.l.b16 %v1444
    %v1549 = vunpack.c.l.b16 %v1445
    %v1550 = vunpack.c.l.b16 %v1446
    %v1551 = vunpack.c.l.b16 %v1447
    %v1552 = vunpack.c.l.b16 %v1448
    %v1553 = vunpack.c.l.b16 %v1449
    %v1554 = vunpack.c.l.b16 %v1450
    %v1555 = vunpack.c.l.b16 %v1451
    %v1556 = vunpack.c.l.b16 %v1452
    %v1557 = vunpack.c.l.b16 %v1453
    %v1558 = vunpack.c.l.b16 %v1454
    %v1559 = vunpack.c.l.b16 %v1455
    %v1560 = vunpack.c.l.b16 %v1456
    %v1561 = vunpack.c.l.b16 %v1457
    %v1562 = vunpack.c.l.b16 %v1458
    %v1563 = vunpack.c.l.b16 %v1459
    %v1564 = vunpack.c.l.b16 %v1460
    %v1565 = vunpack.c.l.b16 %v1461
    %v1566 = vunpack.c.l.b16 %v1462
    %v1567 = vunpack.c.l.b16 %v1463
    %v1568 = vunpack.c.l.b16 %v1464
    %v1569 = vunpack.c.l.b16 %v1465
    %v1570 = vunpack.c.l.b16 %v1466
    %v1571 = vunpack.c.l.b16 %v1467
    %v1572 = vunpack.c.l.b16 %v1468
    %v1573 = vunpack.c.l.b16 %v1469
    %v1574 = vunpack.c.l.b16 %v1470
    %v1575 = vpack.c.b16 %v1526, %v1525
    %v1576 = vpack.c.b16 %v1528, %v1527
    %v1577 = vpack.c.b16 %v1530, %v1529
    %v1578 = vpack.c.b16 %v1532, %v1531
    %v1579 = vpack.c.b16 %v1534, %v1533
    %v1580 = vpack.c.b16 %v1536, %v1535
    %v1581 = vpack.c.b16 %v1538, %v1537
    %v1582 = vpack.c.b16 %v1540, %v1539
    %v1583 = vpack.c.b16 %v1542, %v1541
    %v1584 = vpack.c.b16 %v1544, %v1543
    %v1585 = vpack.c.b16 %v1546, %v1545
    %v1586 = vpack.c.b16 %v1548, %v1547
    %v1587 = vpack.c.b16 %v1550, %v1549
    %v1588 = vpack.c.b16 %v1552, %v1551
    %v1589 = vpack.c.b16 %v1554, %v1553
    %v1590 = vpack.c.b16 %v1556, %v1555
    %v1591 = vpack.c.b16 %v1558, %v1557
    %v1592 = vpack.c.b16 %v1560, %v1559
    %v1593 = vpack.c.b16 %v1562, %v1561
    %v1594 = vpack.c.b16 %v1564, %v1563
    %v1595 = vpack.c.b16 %v1566, %v1565
    %v1596 = vpack.c.b16 %v1568, %v1567
    %v1597 = vpack.c.b16 %v1570, %v1569
    %v1598 = vpack.c.b16 %v1572, %v1571
    %v1599 = vpack.c.b16 %v1574, %v1573
    %1625 = vmatpush.bf16.msra.mxu0 %v1582
    %1626 = vmatpush.bf16.msra.mxu0 %v1581
    %1627 = vmatpush.bf16.msra.mxu0 %v1580
    %1628 = vmatpush.bf16.msra.mxu0 %v1579
    %1629 = vmatpush.bf16.msra.mxu0 %v1578
    %1630 = vmatpush.bf16.msra.mxu0 %v1577
    %1631 = vmatpush.bf16.msra.mxu0 %v1576
    %1632 = vmatpush.bf16.msra.mxu0 %v1575
    %1633 = vmatmul.bf16.gmra.mxu0 %v71
    %v1634 = vpop.f32.mrf.mxu0
    %v1635 = vadd.f32 %v1473, %v1634
    %v1636 = vpop.f32.mrf.mxu0
    %1637 = vdwg.mxu0
    %1638 = vmatpush.bf16.msra.mxu0 %v1590
    %1639 = vmatpush.bf16.msra.mxu0 %v1589
    %1640 = vmatpush.bf16.msra.mxu0 %v1588
    %1641 = vmatpush.bf16.msra.mxu0 %v1587
    %1642 = vmatpush.bf16.msra.mxu0 %v1586
    %1643 = vmatpush.bf16.msra.mxu0 %v1585
    %1644 = vmatpush.bf16.msra.mxu0 %v1584
    %1645 = vmatpush.bf16.msra.mxu0 %v1583
    %1646 = vmatmul.bf16.gmra.mxu0 %v72
    %v1647 = vpop.f32.mrf.mxu0
    %v1648 = vadd.f32 %v1635, %v1647
    %v1649 = vpop.f32.mrf.mxu0
    %1650 = vdwg.mxu0
    %1651 = vmatpush.bf16.msra.mxu0 %v1598
    %1652 = vmatpush.bf16.msra.mxu0 %v1597
    %1653 = vmatpush.bf16.msra.mxu0 %v1596
    %1654 = vmatpush.bf16.msra.mxu0 %v1595
    %1655 = vmatpush.bf16.msra.mxu0 %v1594
    %1656 = vmatpush.bf16.msra.mxu0 %v1593
    %1657 = vmatpush.bf16.msra.mxu0 %v1592
    %1658 = vmatpush.bf16.msra.mxu0 %v1591
    %1659 = vmatmul.bf16.gmra.mxu0 %v73
    %v1660 = vpop.f32.mrf.mxu0
    %v1661 = vadd.f32 %v1648, %v1660
    %v1662 = vpop.f32.mrf.mxu0
    %1663 = vdwg.mxu0
    %1664 = vmatpush.bf16.msra.mxu0 0
    %1665 = vmatpush.bf16.msra.mxu0 0
    %1666 = vmatpush.bf16.msra.mxu0 0
    %1667 = vmatpush.bf16.msra.mxu0 0
    %1668 = vmatpush.bf16.msra.mxu0 0
    %1669 = vmatpush.bf16.msra.mxu0 0
    %1670 = vmatpush.bf16.msra.mxu0 0
    %1671 = vmatpush.bf16.msra.mxu0 %v1599
    %1672 = vmatmul.bf16.gmra.mxu0 %v281
    %v1673 = vpop.f32.mrf.mxu0
    %v1674 = vadd.f32 %v1661, %v1673
    %v1675 = vpop.f32.mrf.mxu0
    %1676 = vdwg.mxu0
    %v1677 = vmax.f32 %v1674, 0.0
    %v1678 = vpack.c.bf16 %v1677, %v1677
    %v1679 = vld [vmem:[#allocation5 + $0x100] sm:$0xf]
    %v1680 = vld [vmem:[#allocation5 + $0x104] sm:$0xf]
    %v1681 = vld [vmem:[#allocation5 + $0x108] sm:$0xf]
    %v1682 = vld [vmem:[#allocation5 + $0x10c] sm:$0xf]
    %v1683 = vld [vmem:[#allocation5 + $0x110] sm:$0xf]
    %v1684 = vld [vmem:[#allocation5 + $0x114] sm:$0xf]
    %v1685 = vld [vmem:[#allocation5 + $0x118] sm:$0xf]
    %v1686 = vld [vmem:[#allocation5 + $0x11c] sm:$0xf]
    %v1687 = vld [vmem:[#allocation5 + $0x120] sm:$0xf]
    %v1688 = vld [vmem:[#allocation5 + $0x124] sm:$0xf]
    %v1689 = vld [vmem:[#allocation5 + $0x128] sm:$0xf]
    %v1690 = vld [vmem:[#allocation5 + $0x12c] sm:$0xf]
    %v1691 = vld [vmem:[#allocation5 + $0x130] sm:$0xf]
    %v1692 = vld [vmem:[#allocation5 + $0x134] sm:$0xf]
    %v1693 = vld [vmem:[#allocation5 + $0x138] sm:$0xf]
    %v1694 = vld [vmem:[#allocation5 + $0x13c] sm:$0xf]
    %v1711 = vunpack.c.l.b16 %v1679
    %v1712 = vunpack.c.l.b16 %v1680
    %v1713 = vunpack.c.l.b16 %v1681
    %v1714 = vunpack.c.l.b16 %v1682
    %v1715 = vunpack.c.l.b16 %v1683
    %v1716 = vunpack.c.l.b16 %v1684
    %v1717 = vunpack.c.l.b16 %v1685
    %v1718 = vunpack.c.l.b16 %v1686
    %v1719 = vunpack.c.l.b16 %v1687
    %v1720 = vunpack.c.l.b16 %v1688
    %v1721 = vunpack.c.l.b16 %v1689
    %v1722 = vunpack.c.l.b16 %v1690
    %v1723 = vunpack.c.l.b16 %v1691
    %v1724 = vunpack.c.l.b16 %v1692
    %v1725 = vunpack.c.l.b16 %v1693
    %v1726 = vunpack.c.l.b16 %v1694
    %v1727 = vpack.c.b16 %v1712, %v1711
    %v1728 = vpack.c.b16 %v1714, %v1713
    %v1729 = vpack.c.b16 %v1716, %v1715
    %v1730 = vpack.c.b16 %v1718, %v1717
    %v1731 = vpack.c.b16 %v1720, %v1719
    %v1732 = vpack.c.b16 %v1722, %v1721
    %v1733 = vpack.c.b16 %v1724, %v1723
    %v1734 = vpack.c.b16 %v1726, %v1725
    %1743 = vmatpush.bf16.msra.mxu0 %v1734
    %1744 = vmatpush.bf16.msra.mxu0 %v1733
    %1745 = vmatpush.bf16.msra.mxu0 %v1732
    %1746 = vmatpush.bf16.msra.mxu0 %v1731
    %1747 = vmatpush.bf16.msra.mxu0 %v1730
    %1748 = vmatpush.bf16.msra.mxu0 %v1729
    %1749 = vmatpush.bf16.msra.mxu0 %v1728
    %1750 = vmatpush.bf16.msra.mxu0 %v1727
    %1751 = vmatmul.bf16.gmra.mxu0 %v1678
    %v1752 = vpop.f32.mrf.mxu0
    %v1753 = vadd.f32 0.0, %v1752
    %v1754 = vpop.f32.mrf.mxu0
    %1755 = vdwg.mxu0
    %v1756 = vadd.f32 %v1420, %v1753
    %v1757 = vld [vmem:[#allocation2 + $0x14] sm:$0xf]
    %v1758 = vld [vmem:[#allocation2 + $0x34] sm:$0xf]
    %v1759 = vld [vmem:[#allocation2 + $0x54] sm:$0xf]
    %v1760 = vld [vmem:[#allocation2 + $0x74] sm:$0xf]
    %v1761 = vld [vmem:[#allocation2 + $0x94] sm:$0xf]
    %v1762 = vld [vmem:[#allocation2 + $0xb4] sm:$0xf]
    %v1763 = vld [vmem:[#allocation2 + $0xd4] sm:$0xf]
    %v1764 = vld [vmem:[#allocation2 + $0xf4] sm:$0xf]
    %v1765 = vld [vmem:[#allocation2 + $0x114] sm:$0xf]
    %v1766 = vld [vmem:[#allocation2 + $0x134] sm:$0xf]
    %v1767 = vld [vmem:[#allocation2 + $0x154] sm:$0xf]
    %v1768 = vld [vmem:[#allocation2 + $0x174] sm:$0xf]
    %v1769 = vld [vmem:[#allocation2 + $0x194] sm:$0xf]
    %v1770 = vld [vmem:[#allocation2 + $0x1b4] sm:$0xf]
    %v1771 = vld [vmem:[#allocation2 + $0x1d4] sm:$0xf]
    %v1772 = vld [vmem:[#allocation2 + $0x1f4] sm:$0xf]
    %v1773 = vld [vmem:[#allocation2 + $0x214] sm:$0xf]
    %v1774 = vld [vmem:[#allocation2 + $0x234] sm:$0xf]
    %v1775 = vld [vmem:[#allocation2 + $0x254] sm:$0xf]
    %v1776 = vld [vmem:[#allocation2 + $0x274] sm:$0xf]
    %v1777 = vld [vmem:[#allocation2 + $0x294] sm:$0xf]
    %v1778 = vld [vmem:[#allocation2 + $0x2b4] sm:$0xf]
    %v1779 = vld [vmem:[#allocation2 + $0x2d4] sm:$0xf]
    %v1780 = vld [vmem:[#allocation2 + $0x2f4] sm:$0xf]
    %v1781 = vld [vmem:[#allocation2 + $0x314] sm:$0xf]
    %v1782 = vld [vmem:[#allocation2 + $0x334] sm:$0xf]
    %v1783 = vld [vmem:[#allocation2 + $0x354] sm:$0xf]
    %v1784 = vld [vmem:[#allocation2 + $0x374] sm:$0xf]
    %v1785 = vld [vmem:[#allocation2 + $0x394] sm:$0xf]
    %v1786 = vld [vmem:[#allocation2 + $0x3b4] sm:$0xf]
    %v1787 = vld [vmem:[#allocation2 + $0x3d4] sm:$0xf]
    %v1788 = vld [vmem:[#allocation2 + $0x3f4] sm:$0xf]
    %v1789 = vld [vmem:[#allocation2 + $0x414] sm:$0xf]
    %v1790 = vld [vmem:[#allocation2 + $0x434] sm:$0xf]
    %v1791 = vld [vmem:[#allocation2 + $0x454] sm:$0xf]
    %v1792 = vld [vmem:[#allocation2 + $0x474] sm:$0xf]
    %v1793 = vld [vmem:[#allocation2 + $0x494] sm:$0xf]
    %v1794 = vld [vmem:[#allocation2 + $0x4b4] sm:$0xf]
    %v1795 = vld [vmem:[#allocation2 + $0x4d4] sm:$0xf]
    %v1796 = vld [vmem:[#allocation2 + $0x4f4] sm:$0xf]
    %v1797 = vld [vmem:[#allocation2 + $0x514] sm:$0xf]
    %v1798 = vld [vmem:[#allocation2 + $0x534] sm:$0xf]
    %v1799 = vld [vmem:[#allocation2 + $0x554] sm:$0xf]
    %v1800 = vld [vmem:[#allocation2 + $0x574] sm:$0xf]
    %v1801 = vld [vmem:[#allocation2 + $0x594] sm:$0xf]
    %v1802 = vld [vmem:[#allocation2 + $0x5b4] sm:$0xf]
    %v1803 = vld [vmem:[#allocation2 + $0x5d4] sm:$0xf]
    %v1804 = vld [vmem:[#allocation2 + $0x5f4] sm:$0xf]
    %v1805 = vld [vmem:[#allocation2 + $0x614] sm:$0xf]
    %v1806 = vld [vmem:[#allocation2 + $0x634] sm:$0xf]
    %v1807 = vld [vmem:[%s2 + $0x5] sm:$0x1]
    %v1809 = vperm.slane %v1807, 0
    %v1861 = vunpack.c.l.b16 %v1757
    %v1862 = vunpack.c.l.b16 %v1758
    %v1863 = vunpack.c.l.b16 %v1759
    %v1864 = vunpack.c.l.b16 %v1760
    %v1865 = vunpack.c.l.b16 %v1761
    %v1866 = vunpack.c.l.b16 %v1762
    %v1867 = vunpack.c.l.b16 %v1763
    %v1868 = vunpack.c.l.b16 %v1764
    %v1869 = vunpack.c.l.b16 %v1765
    %v1870 = vunpack.c.l.b16 %v1766
    %v1871 = vunpack.c.l.b16 %v1767
    %v1872 = vunpack.c.l.b16 %v1768
    %v1873 = vunpack.c.l.b16 %v1769
    %v1874 = vunpack.c.l.b16 %v1770
    %v1875 = vunpack.c.l.b16 %v1771
    %v1876 = vunpack.c.l.b16 %v1772
    %v1877 = vunpack.c.l.b16 %v1773
    %v1878 = vunpack.c.l.b16 %v1774
    %v1879 = vunpack.c.l.b16 %v1775
    %v1880 = vunpack.c.l.b16 %v1776
    %v1881 = vunpack.c.l.b16 %v1777
    %v1882 = vunpack.c.l.b16 %v1778
    %v1883 = vunpack.c.l.b16 %v1779
    %v1884 = vunpack.c.l.b16 %v1780
    %v1885 = vunpack.c.l.b16 %v1781
    %v1886 = vunpack.c.l.b16 %v1782
    %v1887 = vunpack.c.l.b16 %v1783
    %v1888 = vunpack.c.l.b16 %v1784
    %v1889 = vunpack.c.l.b16 %v1785
    %v1890 = vunpack.c.l.b16 %v1786
    %v1891 = vunpack.c.l.b16 %v1787
    %v1892 = vunpack.c.l.b16 %v1788
    %v1893 = vunpack.c.l.b16 %v1789
    %v1894 = vunpack.c.l.b16 %v1790
    %v1895 = vunpack.c.l.b16 %v1791
    %v1896 = vunpack.c.l.b16 %v1792
    %v1897 = vunpack.c.l.b16 %v1793
    %v1898 = vunpack.c.l.b16 %v1794
    %v1899 = vunpack.c.l.b16 %v1795
    %v1900 = vunpack.c.l.b16 %v1796
    %v1901 = vunpack.c.l.b16 %v1797
    %v1902 = vunpack.c.l.b16 %v1798
    %v1903 = vunpack.c.l.b16 %v1799
    %v1904 = vunpack.c.l.b16 %v1800
    %v1905 = vunpack.c.l.b16 %v1801
    %v1906 = vunpack.c.l.b16 %v1802
    %v1907 = vunpack.c.l.b16 %v1803
    %v1908 = vunpack.c.l.b16 %v1804
    %v1909 = vunpack.c.l.b16 %v1805
    %v1910 = vunpack.c.l.b16 %v1806
    %v1911 = vpack.c.b16 %v1862, %v1861
    %v1912 = vpack.c.b16 %v1864, %v1863
    %v1913 = vpack.c.b16 %v1866, %v1865
    %v1914 = vpack.c.b16 %v1868, %v1867
    %v1915 = vpack.c.b16 %v1870, %v1869
    %v1916 = vpack.c.b16 %v1872, %v1871
    %v1917 = vpack.c.b16 %v1874, %v1873
    %v1918 = vpack.c.b16 %v1876, %v1875
    %v1919 = vpack.c.b16 %v1878, %v1877
    %v1920 = vpack.c.b16 %v1880, %v1879
    %v1921 = vpack.c.b16 %v1882, %v1881
    %v1922 = vpack.c.b16 %v1884, %v1883
    %v1923 = vpack.c.b16 %v1886, %v1885
    %v1924 = vpack.c.b16 %v1888, %v1887
    %v1925 = vpack.c.b16 %v1890, %v1889
    %v1926 = vpack.c.b16 %v1892, %v1891
    %v1927 = vpack.c.b16 %v1894, %v1893
    %v1928 = vpack.c.b16 %v1896, %v1895
    %v1929 = vpack.c.b16 %v1898, %v1897
    %v1930 = vpack.c.b16 %v1900, %v1899
    %v1931 = vpack.c.b16 %v1902, %v1901
    %v1932 = vpack.c.b16 %v1904, %v1903
    %v1933 = vpack.c.b16 %v1906, %v1905
    %v1934 = vpack.c.b16 %v1908, %v1907
    %v1935 = vpack.c.b16 %v1910, %v1909
    %1961 = vmatpush.bf16.msra.mxu0 %v1918
    %1962 = vmatpush.bf16.msra.mxu0 %v1917
    %1963 = vmatpush.bf16.msra.mxu0 %v1916
    %1964 = vmatpush.bf16.msra.mxu0 %v1915
    %1965 = vmatpush.bf16.msra.mxu0 %v1914
    %1966 = vmatpush.bf16.msra.mxu0 %v1913
    %1967 = vmatpush.bf16.msra.mxu0 %v1912
    %1968 = vmatpush.bf16.msra.mxu0 %v1911
    %1969 = vmatmul.bf16.gmra.mxu0 %v71
    %v1970 = vpop.f32.mrf.mxu0
    %v1971 = vadd.f32 %v1809, %v1970
    %v1972 = vpop.f32.mrf.mxu0
    %1973 = vdwg.mxu0
    %1974 = vmatpush.bf16.msra.mxu0 %v1926
    %1975 = vmatpush.bf16.msra.mxu0 %v1925
    %1976 = vmatpush.bf16.msra.mxu0 %v1924
    %1977 = vmatpush.bf16.msra.mxu0 %v1923
    %1978 = vmatpush.bf16.msra.mxu0 %v1922
    %1979 = vmatpush.bf16.msra.mxu0 %v1921
    %1980 = vmatpush.bf16.msra.mxu0 %v1920
    %1981 = vmatpush.bf16.msra.mxu0 %v1919
    %1982 = vmatmul.bf16.gmra.mxu0 %v72
    %v1983 = vpop.f32.mrf.mxu0
    %v1984 = vadd.f32 %v1971, %v1983
    %v1985 = vpop.f32.mrf.mxu0
    %1986 = vdwg.mxu0
    %1987 = vmatpush.bf16.msra.mxu0 %v1934
    %1988 = vmatpush.bf16.msra.mxu0 %v1933
    %1989 = vmatpush.bf16.msra.mxu0 %v1932
    %1990 = vmatpush.bf16.msra.mxu0 %v1931
    %1991 = vmatpush.bf16.msra.mxu0 %v1930
    %1992 = vmatpush.bf16.msra.mxu0 %v1929
    %1993 = vmatpush.bf16.msra.mxu0 %v1928
    %1994 = vmatpush.bf16.msra.mxu0 %v1927
    %1995 = vmatmul.bf16.gmra.mxu0 %v73
    %v1996 = vpop.f32.mrf.mxu0
    %v1997 = vadd.f32 %v1984, %v1996
    %v1998 = vpop.f32.mrf.mxu0
    %1999 = vdwg.mxu0
    %2000 = vmatpush.bf16.msra.mxu0 0
    %2001 = vmatpush.bf16.msra.mxu0 0
    %2002 = vmatpush.bf16.msra.mxu0 0
    %2003 = vmatpush.bf16.msra.mxu0 0
    %2004 = vmatpush.bf16.msra.mxu0 0
    %2005 = vmatpush.bf16.msra.mxu0 0
    %2006 = vmatpush.bf16.msra.mxu0 0
    %2007 = vmatpush.bf16.msra.mxu0 %v1935
    %2008 = vmatmul.bf16.gmra.mxu0 %v281
    %v2009 = vpop.f32.mrf.mxu0
    %v2010 = vadd.f32 %v1997, %v2009
    %v2011 = vpop.f32.mrf.mxu0
    %2012 = vdwg.mxu0
    %v2013 = vmax.f32 %v2010, 0.0
    %v2014 = vpack.c.bf16 %v2013, %v2013
    %v2015 = vld [vmem:[#allocation5 + $0x140] sm:$0xf]
    %v2016 = vld [vmem:[#allocation5 + $0x144] sm:$0xf]
    %v2017 = vld [vmem:[#allocation5 + $0x148] sm:$0xf]
    %v2018 = vld [vmem:[#allocation5 + $0x14c] sm:$0xf]
    %v2019 = vld [vmem:[#allocation5 + $0x150] sm:$0xf]
    %v2020 = vld [vmem:[#allocation5 + $0x154] sm:$0xf]
    %v2021 = vld [vmem:[#allocation5 + $0x158] sm:$0xf]
    %v2022 = vld [vmem:[#allocation5 + $0x15c] sm:$0xf]
    %v2023 = vld [vmem:[#allocation5 + $0x160] sm:$0xf]
    %v2024 = vld [vmem:[#allocation5 + $0x164] sm:$0xf]
    %v2025 = vld [vmem:[#allocation5 + $0x168] sm:$0xf]
    %v2026 = vld [vmem:[#allocation5 + $0x16c] sm:$0xf]
    %v2027 = vld [vmem:[#allocation5 + $0x170] sm:$0xf]
    %v2028 = vld [vmem:[#allocation5 + $0x174] sm:$0xf]
    %v2029 = vld [vmem:[#allocation5 + $0x178] sm:$0xf]
    %v2030 = vld [vmem:[#allocation5 + $0x17c] sm:$0xf]
    %v2047 = vunpack.c.l.b16 %v2015
    %v2048 = vunpack.c.l.b16 %v2016
    %v2049 = vunpack.c.l.b16 %v2017
    %v2050 = vunpack.c.l.b16 %v2018
    %v2051 = vunpack.c.l.b16 %v2019
    %v2052 = vunpack.c.l.b16 %v2020
    %v2053 = vunpack.c.l.b16 %v2021
    %v2054 = vunpack.c.l.b16 %v2022
    %v2055 = vunpack.c.l.b16 %v2023
    %v2056 = vunpack.c.l.b16 %v2024
    %v2057 = vunpack.c.l.b16 %v2025
    %v2058 = vunpack.c.l.b16 %v2026
    %v2059 = vunpack.c.l.b16 %v2027
    %v2060 = vunpack.c.l.b16 %v2028
    %v2061 = vunpack.c.l.b16 %v2029
    %v2062 = vunpack.c.l.b16 %v2030
    %v2063 = vpack.c.b16 %v2048, %v2047
    %v2064 = vpack.c.b16 %v2050, %v2049
    %v2065 = vpack.c.b16 %v2052, %v2051
    %v2066 = vpack.c.b16 %v2054, %v2053
    %v2067 = vpack.c.b16 %v2056, %v2055
    %v2068 = vpack.c.b16 %v2058, %v2057
    %v2069 = vpack.c.b16 %v2060, %v2059
    %v2070 = vpack.c.b16 %v2062, %v2061
    %2079 = vmatpush.bf16.msra.mxu0 %v2070
    %2080 = vmatpush.bf16.msra.mxu0 %v2069
    %2081 = vmatpush.bf16.msra.mxu0 %v2068
    %2082 = vmatpush.bf16.msra.mxu0 %v2067
    %2083 = vmatpush.bf16.msra.mxu0 %v2066
    %2084 = vmatpush.bf16.msra.mxu0 %v2065
    %2085 = vmatpush.bf16.msra.mxu0 %v2064
    %2086 = vmatpush.bf16.msra.mxu0 %v2063
    %2087 = vmatmul.bf16.gmra.mxu0 %v2014
    %v2088 = vpop.f32.mrf.mxu0
    %v2089 = vadd.f32 0.0, %v2088
    %v2090 = vpop.f32.mrf.mxu0
    %2091 = vdwg.mxu0
    %v2092 = vadd.f32 %v1756, %v2089
    %v2093 = vld [vmem:[#allocation2 + $0x18] sm:$0xf]
    %v2094 = vld [vmem:[#allocation2 + $0x38] sm:$0xf]
    %v2095 = vld [vmem:[#allocation2 + $0x58] sm:$0xf]
    %v2096 = vld [vmem:[#allocation2 + $0x78] sm:$0xf]
    %v2097 = vld [vmem:[#allocation2 + $0x98] sm:$0xf]
    %v2098 = vld [vmem:[#allocation2 + $0xb8] sm:$0xf]
    %v2099 = vld [vmem:[#allocation2 + $0xd8] sm:$0xf]
    %v2100 = vld [vmem:[#allocation2 + $0xf8] sm:$0xf]
    %v2101 = vld [vmem:[#allocation2 + $0x118] sm:$0xf]
    %v2102 = vld [vmem:[#allocation2 + $0x138] sm:$0xf]
    %v2103 = vld [vmem:[#allocation2 + $0x158] sm:$0xf]
    %v2104 = vld [vmem:[#allocation2 + $0x178] sm:$0xf]
    %v2105 = vld [vmem:[#allocation2 + $0x198] sm:$0xf]
    %v2106 = vld [vmem:[#allocation2 + $0x1b8] sm:$0xf]
    %v2107 = vld [vmem:[#allocation2 + $0x1d8] sm:$0xf]
    %v2108 = vld [vmem:[#allocation2 + $0x1f8] sm:$0xf]
    %v2109 = vld [vmem:[#allocation2 + $0x218] sm:$0xf]
    %v2110 = vld [vmem:[#allocation2 + $0x238] sm:$0xf]
    %v2111 = vld [vmem:[#allocation2 + $0x258] sm:$0xf]
    %v2112 = vld [vmem:[#allocation2 + $0x278] sm:$0xf]
    %v2113 = vld [vmem:[#allocation2 + $0x298] sm:$0xf]
    %v2114 = vld [vmem:[#allocation2 + $0x2b8] sm:$0xf]
    %v2115 = vld [vmem:[#allocation2 + $0x2d8] sm:$0xf]
    %v2116 = vld [vmem:[#allocation2 + $0x2f8] sm:$0xf]
    %v2117 = vld [vmem:[#allocation2 + $0x318] sm:$0xf]
    %v2118 = vld [vmem:[#allocation2 + $0x338] sm:$0xf]
    %v2119 = vld [vmem:[#allocation2 + $0x358] sm:$0xf]
    %v2120 = vld [vmem:[#allocation2 + $0x378] sm:$0xf]
    %v2121 = vld [vmem:[#allocation2 + $0x398] sm:$0xf]
    %v2122 = vld [vmem:[#allocation2 + $0x3b8] sm:$0xf]
    %v2123 = vld [vmem:[#allocation2 + $0x3d8] sm:$0xf]
    %v2124 = vld [vmem:[#allocation2 + $0x3f8] sm:$0xf]
    %v2125 = vld [vmem:[#allocation2 + $0x418] sm:$0xf]
    %v2126 = vld [vmem:[#allocation2 + $0x438] sm:$0xf]
    %v2127 = vld [vmem:[#allocation2 + $0x458] sm:$0xf]
    %v2128 = vld [vmem:[#allocation2 + $0x478] sm:$0xf]
    %v2129 = vld [vmem:[#allocation2 + $0x498] sm:$0xf]
    %v2130 = vld [vmem:[#allocation2 + $0x4b8] sm:$0xf]
    %v2131 = vld [vmem:[#allocation2 + $0x4d8] sm:$0xf]
    %v2132 = vld [vmem:[#allocation2 + $0x4f8] sm:$0xf]
    %v2133 = vld [vmem:[#allocation2 + $0x518] sm:$0xf]
    %v2134 = vld [vmem:[#allocation2 + $0x538] sm:$0xf]
    %v2135 = vld [vmem:[#allocation2 + $0x558] sm:$0xf]
    %v2136 = vld [vmem:[#allocation2 + $0x578] sm:$0xf]
    %v2137 = vld [vmem:[#allocation2 + $0x598] sm:$0xf]
    %v2138 = vld [vmem:[#allocation2 + $0x5b8] sm:$0xf]
    %v2139 = vld [vmem:[#allocation2 + $0x5d8] sm:$0xf]
    %v2140 = vld [vmem:[#allocation2 + $0x5f8] sm:$0xf]
    %v2141 = vld [vmem:[#allocation2 + $0x618] sm:$0xf]
    %v2142 = vld [vmem:[#allocation2 + $0x638] sm:$0xf]
    %v2143 = vld [vmem:[%s2 + $0x6] sm:$0x1]
    %v2145 = vperm.slane %v2143, 0
    %v2197 = vunpack.c.l.b16 %v2093
    %v2198 = vunpack.c.l.b16 %v2094
    %v2199 = vunpack.c.l.b16 %v2095
    %v2200 = vunpack.c.l.b16 %v2096
    %v2201 = vunpack.c.l.b16 %v2097
    %v2202 = vunpack.c.l.b16 %v2098
    %v2203 = vunpack.c.l.b16 %v2099
    %v2204 = vunpack.c.l.b16 %v2100
    %v2205 = vunpack.c.l.b16 %v2101
    %v2206 = vunpack.c.l.b16 %v2102
    %v2207 = vunpack.c.l.b16 %v2103
    %v2208 = vunpack.c.l.b16 %v2104
    %v2209 = vunpack.c.l.b16 %v2105
    %v2210 = vunpack.c.l.b16 %v2106
    %v2211 = vunpack.c.l.b16 %v2107
    %v2212 = vunpack.c.l.b16 %v2108
    %v2213 = vunpack.c.l.b16 %v2109
    %v2214 = vunpack.c.l.b16 %v2110
    %v2215 = vunpack.c.l.b16 %v2111
    %v2216 = vunpack.c.l.b16 %v2112
    %v2217 = vunpack.c.l.b16 %v2113
    %v2218 = vunpack.c.l.b16 %v2114
    %v2219 = vunpack.c.l.b16 %v2115
    %v2220 = vunpack.c.l.b16 %v2116
    %v2221 = vunpack.c.l.b16 %v2117
    %v2222 = vunpack.c.l.b16 %v2118
    %v2223 = vunpack.c.l.b16 %v2119
    %v2224 = vunpack.c.l.b16 %v2120
    %v2225 = vunpack.c.l.b16 %v2121
    %v2226 = vunpack.c.l.b16 %v2122
    %v2227 = vunpack.c.l.b16 %v2123
    %v2228 = vunpack.c.l.b16 %v2124
    %v2229 = vunpack.c.l.b16 %v2125
    %v2230 = vunpack.c.l.b16 %v2126
    %v2231 = vunpack.c.l.b16 %v2127
    %v2232 = vunpack.c.l.b16 %v2128
    %v2233 = vunpack.c.l.b16 %v2129
    %v2234 = vunpack.c.l.b16 %v2130
    %v2235 = vunpack.c.l.b16 %v2131
    %v2236 = vunpack.c.l.b16 %v2132
    %v2237 = vunpack.c.l.b16 %v2133
    %v2238 = vunpack.c.l.b16 %v2134
    %v2239 = vunpack.c.l.b16 %v2135
    %v2240 = vunpack.c.l.b16 %v2136
    %v2241 = vunpack.c.l.b16 %v2137
    %v2242 = vunpack.c.l.b16 %v2138
    %v2243 = vunpack.c.l.b16 %v2139
    %v2244 = vunpack.c.l.b16 %v2140
    %v2245 = vunpack.c.l.b16 %v2141
    %v2246 = vunpack.c.l.b16 %v2142
    %v2247 = vpack.c.b16 %v2198, %v2197
    %v2248 = vpack.c.b16 %v2200, %v2199
    %v2249 = vpack.c.b16 %v2202, %v2201
    %v2250 = vpack.c.b16 %v2204, %v2203
    %v2251 = vpack.c.b16 %v2206, %v2205
    %v2252 = vpack.c.b16 %v2208, %v2207
    %v2253 = vpack.c.b16 %v2210, %v2209
    %v2254 = vpack.c.b16 %v2212, %v2211
    %v2255 = vpack.c.b16 %v2214, %v2213
    %v2256 = vpack.c.b16 %v2216, %v2215
    %v2257 = vpack.c.b16 %v2218, %v2217
    %v2258 = vpack.c.b16 %v2220, %v2219
    %v2259 = vpack.c.b16 %v2222, %v2221
    %v2260 = vpack.c.b16 %v2224, %v2223
    %v2261 = vpack.c.b16 %v2226, %v2225
    %v2262 = vpack.c.b16 %v2228, %v2227
    %v2263 = vpack.c.b16 %v2230, %v2229
    %v2264 = vpack.c.b16 %v2232, %v2231
    %v2265 = vpack.c.b16 %v2234, %v2233
    %v2266 = vpack.c.b16 %v2236, %v2235
    %v2267 = vpack.c.b16 %v2238, %v2237
    %v2268 = vpack.c.b16 %v2240, %v2239
    %v2269 = vpack.c.b16 %v2242, %v2241
    %v2270 = vpack.c.b16 %v2244, %v2243
    %v2271 = vpack.c.b16 %v2246, %v2245
    %2297 = vmatpush.bf16.msra.mxu0 %v2254
    %2298 = vmatpush.bf16.msra.mxu0 %v2253
    %2299 = vmatpush.bf16.msra.mxu0 %v2252
    %2300 = vmatpush.bf16.msra.mxu0 %v2251
    %2301 = vmatpush.bf16.msra.mxu0 %v2250
    %2302 = vmatpush.bf16.msra.mxu0 %v2249
    %2303 = vmatpush.bf16.msra.mxu0 %v2248
    %2304 = vmatpush.bf16.msra.mxu0 %v2247
    %2305 = vmatmul.bf16.gmra.mxu0 %v71
    %v2306 = vpop.f32.mrf.mxu0
    %v2307 = vadd.f32 %v2145, %v2306
    %v2308 = vpop.f32.mrf.mxu0
    %2309 = vdwg.mxu0
    %2310 = vmatpush.bf16.msra.mxu0 %v2262
    %2311 = vmatpush.bf16.msra.mxu0 %v2261
    %2312 = vmatpush.bf16.msra.mxu0 %v2260
    %2313 = vmatpush.bf16.msra.mxu0 %v2259
    %2314 = vmatpush.bf16.msra.mxu0 %v2258
    %2315 = vmatpush.bf16.msra.mxu0 %v2257
    %2316 = vmatpush.bf16.msra.mxu0 %v2256
    %2317 = vmatpush.bf16.msra.mxu0 %v2255
    %2318 = vmatmul.bf16.gmra.mxu0 %v72
    %v2319 = vpop.f32.mrf.mxu0
    %v2320 = vadd.f32 %v2307, %v2319
    %v2321 = vpop.f32.mrf.mxu0
    %2322 = vdwg.mxu0
    %2323 = vmatpush.bf16.msra.mxu0 %v2270
    %2324 = vmatpush.bf16.msra.mxu0 %v2269
    %2325 = vmatpush.bf16.msra.mxu0 %v2268
    %2326 = vmatpush.bf16.msra.mxu0 %v2267
    %2327 = vmatpush.bf16.msra.mxu0 %v2266
    %2328 = vmatpush.bf16.msra.mxu0 %v2265
    %2329 = vmatpush.bf16.msra.mxu0 %v2264
    %2330 = vmatpush.bf16.msra.mxu0 %v2263
    %2331 = vmatmul.bf16.gmra.mxu0 %v73
    %v2332 = vpop.f32.mrf.mxu0
    %v2333 = vadd.f32 %v2320, %v2332
    %v2334 = vpop.f32.mrf.mxu0
    %2335 = vdwg.mxu0
    %2336 = vmatpush.bf16.msra.mxu0 0
    %2337 = vmatpush.bf16.msra.mxu0 0
    %2338 = vmatpush.bf16.msra.mxu0 0
    %2339 = vmatpush.bf16.msra.mxu0 0
    %2340 = vmatpush.bf16.msra.mxu0 0
    %2341 = vmatpush.bf16.msra.mxu0 0
    %2342 = vmatpush.bf16.msra.mxu0 0
    %2343 = vmatpush.bf16.msra.mxu0 %v2271
    %2344 = vmatmul.bf16.gmra.mxu0 %v281
    %v2345 = vpop.f32.mrf.mxu0
    %v2346 = vadd.f32 %v2333, %v2345
    %v2347 = vpop.f32.mrf.mxu0
    %2348 = vdwg.mxu0
    %v2349 = vmax.f32 %v2346, 0.0
    %v2350 = vpack.c.bf16 %v2349, %v2349
    %v2351 = vld [vmem:[#allocation5 + $0x180] sm:$0xf]
    %v2352 = vld [vmem:[#allocation5 + $0x184] sm:$0xf]
    %v2353 = vld [vmem:[#allocation5 + $0x188] sm:$0xf]
    %v2354 = vld [vmem:[#allocation5 + $0x18c] sm:$0xf]
    %v2355 = vld [vmem:[#allocation5 + $0x190] sm:$0xf]
    %v2356 = vld [vmem:[#allocation5 + $0x194] sm:$0xf]
    %v2357 = vld [vmem:[#allocation5 + $0x198] sm:$0xf]
    %v2358 = vld [vmem:[#allocation5 + $0x19c] sm:$0xf]
    %v2359 = vld [vmem:[#allocation5 + $0x1a0] sm:$0xf]
    %v2360 = vld [vmem:[#allocation5 + $0x1a4] sm:$0xf]
    %v2361 = vld [vmem:[#allocation5 + $0x1a8] sm:$0xf]
    %v2362 = vld [vmem:[#allocation5 + $0x1ac] sm:$0xf]
    %v2363 = vld [vmem:[#allocation5 + $0x1b0] sm:$0xf]
    %v2364 = vld [vmem:[#allocation5 + $0x1b4] sm:$0xf]
    %v2365 = vld [vmem:[#allocation5 + $0x1b8] sm:$0xf]
    %v2366 = vld [vmem:[#allocation5 + $0x1bc] sm:$0xf]
    %v2383 = vunpack.c.l.b16 %v2351
    %v2384 = vunpack.c.l.b16 %v2352
    %v2385 = vunpack.c.l.b16 %v2353
    %v2386 = vunpack.c.l.b16 %v2354
    %v2387 = vunpack.c.l.b16 %v2355
    %v2388 = vunpack.c.l.b16 %v2356
    %v2389 = vunpack.c.l.b16 %v2357
    %v2390 = vunpack.c.l.b16 %v2358
    %v2391 = vunpack.c.l.b16 %v2359
    %v2392 = vunpack.c.l.b16 %v2360
    %v2393 = vunpack.c.l.b16 %v2361
    %v2394 = vunpack.c.l.b16 %v2362
    %v2395 = vunpack.c.l.b16 %v2363
    %v2396 = vunpack.c.l.b16 %v2364
    %v2397 = vunpack.c.l.b16 %v2365
    %v2398 = vunpack.c.l.b16 %v2366
    %v2399 = vpack.c.b16 %v2384, %v2383
    %v2400 = vpack.c.b16 %v2386, %v2385
    %v2401 = vpack.c.b16 %v2388, %v2387
    %v2402 = vpack.c.b16 %v2390, %v2389
    %v2403 = vpack.c.b16 %v2392, %v2391
    %v2404 = vpack.c.b16 %v2394, %v2393
    %v2405 = vpack.c.b16 %v2396, %v2395
    %v2406 = vpack.c.b16 %v2398, %v2397
    %2415 = vmatpush.bf16.msra.mxu0 %v2406
    %2416 = vmatpush.bf16.msra.mxu0 %v2405
    %2417 = vmatpush.bf16.msra.mxu0 %v2404
    %2418 = vmatpush.bf16.msra.mxu0 %v2403
    %2419 = vmatpush.bf16.msra.mxu0 %v2402
    %2420 = vmatpush.bf16.msra.mxu0 %v2401
    %2421 = vmatpush.bf16.msra.mxu0 %v2400
    %2422 = vmatpush.bf16.msra.mxu0 %v2399
    %2423 = vmatmul.bf16.gmra.mxu0 %v2350
    %v2424 = vpop.f32.mrf.mxu0
    %v2425 = vadd.f32 0.0, %v2424
    %v2426 = vpop.f32.mrf.mxu0
    %2427 = vdwg.mxu0
    %v2428 = vadd.f32 %v2092, %v2425
    %v2429 = vld [vmem:[#allocation2 + $0x1c] sm:$0xf]
    %v2430 = vld [vmem:[#allocation2 + $0x3c] sm:$0xf]
    %v2431 = vld [vmem:[#allocation2 + $0x5c] sm:$0xf]
    %v2432 = vld [vmem:[#allocation2 + $0x7c] sm:$0xf]
    %v2433 = vld [vmem:[#allocation2 + $0x9c] sm:$0xf]
    %v2434 = vld [vmem:[#allocation2 + $0xbc] sm:$0xf]
    %v2435 = vld [vmem:[#allocation2 + $0xdc] sm:$0xf]
    %v2436 = vld [vmem:[#allocation2 + $0xfc] sm:$0xf]
    %v2437 = vld [vmem:[#allocation2 + $0x11c] sm:$0xf]
    %v2438 = vld [vmem:[#allocation2 + $0x13c] sm:$0xf]
    %v2439 = vld [vmem:[#allocation2 + $0x15c] sm:$0xf]
    %v2440 = vld [vmem:[#allocation2 + $0x17c] sm:$0xf]
    %v2441 = vld [vmem:[#allocation2 + $0x19c] sm:$0xf]
    %v2442 = vld [vmem:[#allocation2 + $0x1bc] sm:$0xf]
    %v2443 = vld [vmem:[#allocation2 + $0x1dc] sm:$0xf]
    %v2444 = vld [vmem:[#allocation2 + $0x1fc] sm:$0xf]
    %v2445 = vld [vmem:[#allocation2 + $0x21c] sm:$0xf]
    %v2446 = vld [vmem:[#allocation2 + $0x23c] sm:$0xf]
    %v2447 = vld [vmem:[#allocation2 + $0x25c] sm:$0xf]
    %v2448 = vld [vmem:[#allocation2 + $0x27c] sm:$0xf]
    %v2449 = vld [vmem:[#allocation2 + $0x29c] sm:$0xf]
    %v2450 = vld [vmem:[#allocation2 + $0x2bc] sm:$0xf]
    %v2451 = vld [vmem:[#allocation2 + $0x2dc] sm:$0xf]
    %v2452 = vld [vmem:[#allocation2 + $0x2fc] sm:$0xf]
    %v2453 = vld [vmem:[#allocation2 + $0x31c] sm:$0xf]
    %v2454 = vld [vmem:[#allocation2 + $0x33c] sm:$0xf]
    %v2455 = vld [vmem:[#allocation2 + $0x35c] sm:$0xf]
    %v2456 = vld [vmem:[#allocation2 + $0x37c] sm:$0xf]
    %v2457 = vld [vmem:[#allocation2 + $0x39c] sm:$0xf]
    %v2458 = vld [vmem:[#allocation2 + $0x3bc] sm:$0xf]
    %v2459 = vld [vmem:[#allocation2 + $0x3dc] sm:$0xf]
    %v2460 = vld [vmem:[#allocation2 + $0x3fc] sm:$0xf]
    %v2461 = vld [vmem:[#allocation2 + $0x41c] sm:$0xf]
    %v2462 = vld [vmem:[#allocation2 + $0x43c] sm:$0xf]
    %v2463 = vld [vmem:[#allocation2 + $0x45c] sm:$0xf]
    %v2464 = vld [vmem:[#allocation2 + $0x47c] sm:$0xf]
    %v2465 = vld [vmem:[#allocation2 + $0x49c] sm:$0xf]
    %v2466 = vld [vmem:[#allocation2 + $0x4bc] sm:$0xf]
    %v2467 = vld [vmem:[#allocation2 + $0x4dc] sm:$0xf]
    %v2468 = vld [vmem:[#allocation2 + $0x4fc] sm:$0xf]
    %v2469 = vld [vmem:[#allocation2 + $0x51c] sm:$0xf]
    %v2470 = vld [vmem:[#allocation2 + $0x53c] sm:$0xf]
    %v2471 = vld [vmem:[#allocation2 + $0x55c] sm:$0xf]
    %v2472 = vld [vmem:[#allocation2 + $0x57c] sm:$0xf]
    %v2473 = vld [vmem:[#allocation2 + $0x59c] sm:$0xf]
    %v2474 = vld [vmem:[#allocation2 + $0x5bc] sm:$0xf]
    %v2475 = vld [vmem:[#allocation2 + $0x5dc] sm:$0xf]
    %v2476 = vld [vmem:[#allocation2 + $0x5fc] sm:$0xf]
    %v2477 = vld [vmem:[#allocation2 + $0x61c] sm:$0xf]
    %v2478 = vld [vmem:[#allocation2 + $0x63c] sm:$0xf]
    %v2479 = vld [vmem:[%s2 + $0x7] sm:$0x1]
    %v2481 = vperm.slane %v2479, 0
    %v2533 = vunpack.c.l.b16 %v2429
    %v2534 = vunpack.c.l.b16 %v2430
    %v2535 = vunpack.c.l.b16 %v2431
    %v2536 = vunpack.c.l.b16 %v2432
    %v2537 = vunpack.c.l.b16 %v2433
    %v2538 = vunpack.c.l.b16 %v2434
    %v2539 = vunpack.c.l.b16 %v2435
    %v2540 = vunpack.c.l.b16 %v2436
    %v2541 = vunpack.c.l.b16 %v2437
    %v2542 = vunpack.c.l.b16 %v2438
    %v2543 = vunpack.c.l.b16 %v2439
    %v2544 = vunpack.c.l.b16 %v2440
    %v2545 = vunpack.c.l.b16 %v2441
    %v2546 = vunpack.c.l.b16 %v2442
    %v2547 = vunpack.c.l.b16 %v2443
    %v2548 = vunpack.c.l.b16 %v2444
    %v2549 = vunpack.c.l.b16 %v2445
    %v2550 = vunpack.c.l.b16 %v2446
    %v2551 = vunpack.c.l.b16 %v2447
    %v2552 = vunpack.c.l.b16 %v2448
    %v2553 = vunpack.c.l.b16 %v2449
    %v2554 = vunpack.c.l.b16 %v2450
    %v2555 = vunpack.c.l.b16 %v2451
    %v2556 = vunpack.c.l.b16 %v2452
    %v2557 = vunpack.c.l.b16 %v2453
    %v2558 = vunpack.c.l.b16 %v2454
    %v2559 = vunpack.c.l.b16 %v2455
    %v2560 = vunpack.c.l.b16 %v2456
    %v2561 = vunpack.c.l.b16 %v2457
    %v2562 = vunpack.c.l.b16 %v2458
    %v2563 = vunpack.c.l.b16 %v2459
    %v2564 = vunpack.c.l.b16 %v2460
    %v2565 = vunpack.c.l.b16 %v2461
    %v2566 = vunpack.c.l.b16 %v2462
    %v2567 = vunpack.c.l.b16 %v2463
    %v2568 = vunpack.c.l.b16 %v2464
    %v2569 = vunpack.c.l.b16 %v2465
    %v2570 = vunpack.c.l.b16 %v2466
    %v2571 = vunpack.c.l.b16 %v2467
    %v2572 = vunpack.c.l.b16 %v2468
    %v2573 = vunpack.c.l.b16 %v2469
    %v2574 = vunpack.c.l.b16 %v2470
    %v2575 = vunpack.c.l.b16 %v2471
    %v2576 = vunpack.c.l.b16 %v2472
    %v2577 = vunpack.c.l.b16 %v2473
    %v2578 = vunpack.c.l.b16 %v2474
    %v2579 = vunpack.c.l.b16 %v2475
    %v2580 = vunpack.c.l.b16 %v2476
    %v2581 = vunpack.c.l.b16 %v2477
    %v2582 = vunpack.c.l.b16 %v2478
    %v2583 = vpack.c.b16 %v2534, %v2533
    %v2584 = vpack.c.b16 %v2536, %v2535
    %v2585 = vpack.c.b16 %v2538, %v2537
    %v2586 = vpack.c.b16 %v2540, %v2539
    %v2587 = vpack.c.b16 %v2542, %v2541
    %v2588 = vpack.c.b16 %v2544, %v2543
    %v2589 = vpack.c.b16 %v2546, %v2545
    %v2590 = vpack.c.b16 %v2548, %v2547
    %v2591 = vpack.c.b16 %v2550, %v2549
    %v2592 = vpack.c.b16 %v2552, %v2551
    %v2593 = vpack.c.b16 %v2554, %v2553
    %v2594 = vpack.c.b16 %v2556, %v2555
    %v2595 = vpack.c.b16 %v2558, %v2557
    %v2596 = vpack.c.b16 %v2560, %v2559
    %v2597 = vpack.c.b16 %v2562, %v2561
    %v2598 = vpack.c.b16 %v2564, %v2563
    %v2599 = vpack.c.b16 %v2566, %v2565
    %v2600 = vpack.c.b16 %v2568, %v2567
    %v2601 = vpack.c.b16 %v2570, %v2569
    %v2602 = vpack.c.b16 %v2572, %v2571
    %v2603 = vpack.c.b16 %v2574, %v2573
    %v2604 = vpack.c.b16 %v2576, %v2575
    %v2605 = vpack.c.b16 %v2578, %v2577
    %v2606 = vpack.c.b16 %v2580, %v2579
    %v2607 = vpack.c.b16 %v2582, %v2581
    %2633 = vmatpush.bf16.msra.mxu0 %v2590
    %2634 = vmatpush.bf16.msra.mxu0 %v2589
    %2635 = vmatpush.bf16.msra.mxu0 %v2588
    %2636 = vmatpush.bf16.msra.mxu0 %v2587
    %2637 = vmatpush.bf16.msra.mxu0 %v2586
    %2638 = vmatpush.bf16.msra.mxu0 %v2585
    %2639 = vmatpush.bf16.msra.mxu0 %v2584
    %2640 = vmatpush.bf16.msra.mxu0 %v2583
    %2641 = vmatmul.bf16.gmra.mxu0 %v71
    %v2642 = vpop.f32.mrf.mxu0
    %v2643 = vadd.f32 %v2481, %v2642
    %v2644 = vpop.f32.mrf.mxu0
    %2645 = vdwg.mxu0
    %2646 = vmatpush.bf16.msra.mxu0 %v2598
    %2647 = vmatpush.bf16.msra.mxu0 %v2597
    %2648 = vmatpush.bf16.msra.mxu0 %v2596
    %2649 = vmatpush.bf16.msra.mxu0 %v2595
    %2650 = vmatpush.bf16.msra.mxu0 %v2594
    %2651 = vmatpush.bf16.msra.mxu0 %v2593
    %2652 = vmatpush.bf16.msra.mxu0 %v2592
    %2653 = vmatpush.bf16.msra.mxu0 %v2591
    %2654 = vmatmul.bf16.gmra.mxu0 %v72
    %v2655 = vpop.f32.mrf.mxu0
    %v2656 = vadd.f32 %v2643, %v2655
    %v2657 = vpop.f32.mrf.mxu0
    %2658 = vdwg.mxu0
    %2659 = vmatpush.bf16.msra.mxu0 %v2606
    %2660 = vmatpush.bf16.msra.mxu0 %v2605
    %2661 = vmatpush.bf16.msra.mxu0 %v2604
    %2662 = vmatpush.bf16.msra.mxu0 %v2603
    %2663 = vmatpush.bf16.msra.mxu0 %v2602
    %2664 = vmatpush.bf16.msra.mxu0 %v2601
    %2665 = vmatpush.bf16.msra.mxu0 %v2600
    %2666 = vmatpush.bf16.msra.mxu0 %v2599
    %2667 = vmatmul.bf16.gmra.mxu0 %v73
    %v2668 = vpop.f32.mrf.mxu0
    %v2669 = vadd.f32 %v2656, %v2668
    %v2670 = vpop.f32.mrf.mxu0
    %2671 = vdwg.mxu0
    %2672 = vmatpush.bf16.msra.mxu0 0
    %2673 = vmatpush.bf16.msra.mxu0 0
    %2674 = vmatpush.bf16.msra.mxu0 0
    %2675 = vmatpush.bf16.msra.mxu0 0
    %2676 = vmatpush.bf16.msra.mxu0 0
    %2677 = vmatpush.bf16.msra.mxu0 0
    %2678 = vmatpush.bf16.msra.mxu0 0
    %2679 = vmatpush.bf16.msra.mxu0 %v2607
    %2680 = vmatmul.bf16.gmra.mxu0 %v281
    %v2681 = vpop.f32.mrf.mxu0
    %v2682 = vadd.f32 %v2669, %v2681
    %v2683 = vpop.f32.mrf.mxu0
    %2684 = vdwg.mxu0
    %v2685 = vmax.f32 %v2682, 0.0
    %v2686 = vpack.c.bf16 %v2685, %v2685
    %v2687 = vld [vmem:[#allocation5 + $0x1c0] sm:$0xf]
    %v2688 = vld [vmem:[#allocation5 + $0x1c4] sm:$0xf]
    %v2689 = vld [vmem:[#allocation5 + $0x1c8] sm:$0xf]
    %v2690 = vld [vmem:[#allocation5 + $0x1cc] sm:$0xf]
    %v2691 = vld [vmem:[#allocation5 + $0x1d0] sm:$0xf]
    %v2692 = vld [vmem:[#allocation5 + $0x1d4] sm:$0xf]
    %v2693 = vld [vmem:[#allocation5 + $0x1d8] sm:$0xf]
    %v2694 = vld [vmem:[#allocation5 + $0x1dc] sm:$0xf]
    %v2695 = vld [vmem:[#allocation5 + $0x1e0] sm:$0xf]
    %v2696 = vld [vmem:[#allocation5 + $0x1e4] sm:$0xf]
    %v2697 = vld [vmem:[#allocation5 + $0x1e8] sm:$0xf]
    %v2698 = vld [vmem:[#allocation5 + $0x1ec] sm:$0xf]
    %v2699 = vld [vmem:[#allocation5 + $0x1f0] sm:$0xf]
    %v2700 = vld [vmem:[#allocation5 + $0x1f4] sm:$0xf]
    %v2701 = vld [vmem:[#allocation5 + $0x1f8] sm:$0xf]
    %v2702 = vld [vmem:[#allocation5 + $0x1fc] sm:$0xf]
    %v2719 = vunpack.c.l.b16 %v2687
    %v2720 = vunpack.c.l.b16 %v2688
    %v2721 = vunpack.c.l.b16 %v2689
    %v2722 = vunpack.c.l.b16 %v2690
    %v2723 = vunpack.c.l.b16 %v2691
    %v2724 = vunpack.c.l.b16 %v2692
    %v2725 = vunpack.c.l.b16 %v2693
    %v2726 = vunpack.c.l.b16 %v2694
    %v2727 = vunpack.c.l.b16 %v2695
    %v2728 = vunpack.c.l.b16 %v2696
    %v2729 = vunpack.c.l.b16 %v2697
    %v2730 = vunpack.c.l.b16 %v2698
    %v2731 = vunpack.c.l.b16 %v2699
    %v2732 = vunpack.c.l.b16 %v2700
    %v2733 = vunpack.c.l.b16 %v2701
    %v2734 = vunpack.c.l.b16 %v2702
    %v2735 = vpack.c.b16 %v2720, %v2719
    %v2736 = vpack.c.b16 %v2722, %v2721
    %v2737 = vpack.c.b16 %v2724, %v2723
    %v2738 = vpack.c.b16 %v2726, %v2725
    %v2739 = vpack.c.b16 %v2728, %v2727
    %v2740 = vpack.c.b16 %v2730, %v2729
    %v2741 = vpack.c.b16 %v2732, %v2731
    %v2742 = vpack.c.b16 %v2734, %v2733
    %2751 = vmatpush.bf16.msra.mxu0 %v2742
    %2752 = vmatpush.bf16.msra.mxu0 %v2741
    %2753 = vmatpush.bf16.msra.mxu0 %v2740
    %2754 = vmatpush.bf16.msra.mxu0 %v2739
    %2755 = vmatpush.bf16.msra.mxu0 %v2738
    %2756 = vmatpush.bf16.msra.mxu0 %v2737
    %2757 = vmatpush.bf16.msra.mxu0 %v2736
    %2758 = vmatpush.bf16.msra.mxu0 %v2735
    %2759 = vmatmul.bf16.gmra.mxu0 %v2686
    %v2760 = vpop.f32.mrf.mxu0
    %v2761 = vadd.f32 0.0, %v2760
    %v2762 = vpop.f32.mrf.mxu0
    %2763 = vdwg.mxu0
    %v2764 = vadd.f32 %v2428, %v2761
    %v2765 = vld [vmem:[%s4] sm:$0x1]
    %v2767 = vperm.slane %v2765, 0
    %v2769 = vadd.f32 %v2764, %v2767
    %v2770 = vmax.f32 %v2769, 0.0
    %v2771 = vpack.c.bf16 %v2770, %v2770
    %v2772 = vld [vmem:[%s5] sm:$0xf]
    %v2773 = vld [vmem:[%s5 + $0x4] sm:$0xf]
    %v2774 = vld [vmem:[%s5 + $0x8] sm:$0xf]
    %v2775 = vld [vmem:[%s5 + $0xc] sm:$0xf]
    %v2776 = vld [vmem:[%s5 + $0x10] sm:$0xf]
    %v2777 = vld [vmem:[%s5 + $0x14] sm:$0xf]
    %v2778 = vld [vmem:[%s5 + $0x18] sm:$0xf]
    %v2779 = vld [vmem:[%s5 + $0x1c] sm:$0xf]
    %v2780 = vld [vmem:[%s5 + $0x20] sm:$0xf]
    %v2781 = vld [vmem:[%s5 + $0x24] sm:$0xf]
    %v2782 = vld [vmem:[%s5 + $0x28] sm:$0xf]
    %v2783 = vld [vmem:[%s5 + $0x2c] sm:$0xf]
    %v2784 = vld [vmem:[%s5 + $0x30] sm:$0xf]
    %v2785 = vld [vmem:[%s5 + $0x34] sm:$0xf]
    %v2786 = vld [vmem:[%s5 + $0x38] sm:$0xf]
    %v2787 = vld [vmem:[%s5 + $0x3c] sm:$0xf]
    %v2788 = vld [vmem:[%s6] sm:$0x1]
    %v2790 = vperm.slane %v2788, 0
    %v2808 = vunpack.c.l.b16 %v2772
    %v2809 = vunpack.c.l.b16 %v2773
    %v2810 = vunpack.c.l.b16 %v2774
    %v2811 = vunpack.c.l.b16 %v2775
    %v2812 = vunpack.c.l.b16 %v2776
    %v2813 = vunpack.c.l.b16 %v2777
    %v2814 = vunpack.c.l.b16 %v2778
    %v2815 = vunpack.c.l.b16 %v2779
    %v2816 = vunpack.c.l.b16 %v2780
    %v2817 = vunpack.c.l.b16 %v2781
    %v2818 = vunpack.c.l.b16 %v2782
    %v2819 = vunpack.c.l.b16 %v2783
    %v2820 = vunpack.c.l.b16 %v2784
    %v2821 = vunpack.c.l.b16 %v2785
    %v2822 = vunpack.c.l.b16 %v2786
    %v2823 = vunpack.c.l.b16 %v2787
    %v2824 = vpack.c.b16 %v2809, %v2808
    %v2825 = vpack.c.b16 %v2811, %v2810
    %v2826 = vpack.c.b16 %v2813, %v2812
    %v2827 = vpack.c.b16 %v2815, %v2814
    %v2828 = vpack.c.b16 %v2817, %v2816
    %v2829 = vpack.c.b16 %v2819, %v2818
    %v2830 = vpack.c.b16 %v2821, %v2820
    %v2831 = vpack.c.b16 %v2823, %v2822
    %2840 = vmatpush.bf16.msra.mxu0 %v2831
    %2841 = vmatpush.bf16.msra.mxu0 %v2830
    %2842 = vmatpush.bf16.msra.mxu0 %v2829
    %2843 = vmatpush.bf16.msra.mxu0 %v2828
    %2844 = vmatpush.bf16.msra.mxu0 %v2827
    %2845 = vmatpush.bf16.msra.mxu0 %v2826
    %2846 = vmatpush.bf16.msra.mxu0 %v2825
    %2847 = vmatpush.bf16.msra.mxu0 %v2824
    %2848 = vmatmul.bf16.gmra.mxu0 %v2771
    %v2849 = vpop.f32.mrf.mxu0
    %v2850 = vadd.f32 %v2790, %v2849
    %v2851 = vpop.f32.mrf.mxu0
    %2852 = vdwg.mxu0
    %2853 = vst [vmem:[#allocation7] sm:$0x3] %v2850
    // Predicated region
    $region38: #{_lambda_.1} parent=1 // pred_check
      _
    $region39: #{_lambda_.1} parent=1 // pred_check_branch
      %2855 = sbr.rel (0) target = $region41
    $region40: #{_lambda_.1} parent=1 // pred_region
      %2857 = vsyncadd [#allocation4], 0
      %s2859 = sshll.u32 [#allocation7], 4
      %s2860 = int_to_ptr.vmem [resolvable:$true] %s2859
      %s2861 = sshll.u32 %s7, 4
      %s2862 = int_to_ptr.hbm [resolvable:$true] %s2861
      %2864 = dma.vmem_to_hbm [thread:$0]  %s2860, 32, %s2862, [#allocation4]
    $region41: #{_lambda_.1} parent=1 // pred_fallthru
      _
    // Predicated region
    $region42: #{_lambda_.1} parent=1 // pred_check
      _
    $region43: #{_lambda_.1} parent=1 // pred_check_branch
      %2866 = sbr.rel (0) target = $region45
    $region44: #{_lambda_.1} parent=1 // pred_region
      %2868 = dma.done [#allocation4], 32
    $region45: #{_lambda_.1} parent=1 // pred_fallthru
      _
    %2869 = vsyncpa [#allocation3], 1
    %2870 = vsyncpa [#allocation6], 1
    %2871 = vsyncpa [#allocation4], 1

</llo_original>
